<compile_context>
chip_gen: v7x
topology: tpu7x:2x2x1
jax: 0.10.0
libtpu: 0.0.40
codegen_flags: <defaults>
</compile_context>

<pallas_src>
import numpy as np
import jax
import jax.numpy as jnp
from jax.experimental import pallas as pl
from jax.experimental.pallas import tpu as pltpu


# ----------------------------------------------------------------------------
# Beta schedule (host-side setup glue, mirrors make_beta_schedule('linear')).
# ----------------------------------------------------------------------------
def make_beta_schedule_linear(n_timestep, linear_start=1e-4, linear_end=2e-2):
    return np.linspace(linear_start, linear_end, n_timestep, dtype=np.float64)


# ----------------------------------------------------------------------------
# Fused diffusion-loss kernel: one (batch, pixel-tile) block per grid step.
# All heavy contractions on the MXU; per-batch effective weights prefetched
# via BlockSpec (index depends only on b).
# ----------------------------------------------------------------------------
def diffusion_loss_kernel(
    hr_ref,     # (1, C, T)  f32 : HR tile, channels-major (pixels on lanes)
    lr1_ref,    # (1, C, T)  f32
    lr2_ref,    # (1, C, T)  f32
    lr3_ref,    # (1, C, T)  f32
    nz_ref,     # (1, C, T)  f32 : gaussian noise tile
    wlr1_ref,   # (1, Hd, C) f32 : per-batch effective weight on LR1
    wlr2_ref,   # (1, Hd, C) f32
    wlr3_ref,   # (1, Hd, C) f32
    whr_ref,    # (1, Hd, C) f32 : per-batch effective weight on HR
    wnz_ref,    # (1, Hd, C) f32 : per-batch effective weight on noise
    beff_ref,   # (1, Hd, 1) f32 : per-batch effective bias (incl. noise-level)
    w2_ref,     # (C, Hd)    f32 : denoise layer-2 weight
    b2_ref,     # (C, 1)     f32 : denoise layer-2 bias
    loss_ref,   # (1, 1, 1, 128) f32 : per-block partial L1 sum (lane-replicated)
):
    f32 = jnp.float32
    hr = hr_ref[0]          # (C, T)
    lr1 = lr1_ref[0]
    lr2 = lr2_ref[0]
    lr3 = lr3_ref[0]
    nz = nz_ref[0]

    # ---- folded layer-1: 5 accumulating MXU dots + effective bias, ReLU ----
    h = (jnp.dot(wlr1_ref[0], lr1, preferred_element_type=f32)
         + jnp.dot(wlr2_ref[0], lr2, preferred_element_type=f32)
         + jnp.dot(wlr3_ref[0], lr3, preferred_element_type=f32)
         + jnp.dot(whr_ref[0], hr, preferred_element_type=f32)
         + jnp.dot(wnz_ref[0], nz, preferred_element_type=f32)
         + beff_ref[0])                                  # (Hd, T)
    h = jnp.maximum(h, 0.0)

    # ---- layer-2 on the MXU, fused with L1(reduction='sum') -----------------
    recon = jnp.dot(w2_ref[...], h, preferred_element_type=f32) + b2_ref[...]
    partial = jnp.sum(jnp.abs(nz - recon))               # scalar f32

    # small lane-dense store of the per-block partial loss
    loss_ref[...] = jnp.broadcast_to(partial, loss_ref.shape)


# ----------------------------------------------------------------------------
# Wrapper: noise schedule, RNG, per-batch weight folding, pallas_call, reduce.
# ----------------------------------------------------------------------------
def gaussian_diffusion_forward(x_in, params, key, n_timestep=32,
                               tile_hw=None, rng=None):
    """Reproduces GaussianDiffusion.forward == p_losses (returns scalar loss)."""
    HR = x_in["HR"]
    B, C, H, W = HR.shape
    HW = H * W
    Hd = params["w1"].shape[0]

    # ----- noise schedule (host numpy, as in set_new_noise_schedule) -----
    betas = make_beta_schedule_linear(n_timestep)
    alphas_cumprod = np.cumprod(1.0 - betas, axis=0)
    sqrt_alphas_cumprod_prev = np.sqrt(np.append(1.0, alphas_cumprod))

    # ----- timestep & continuous noise level (mirrors np.random in p_losses)
    if rng is None:
        rng = np.random.default_rng()
    t = int(rng.integers(1, n_timestep + 1))        # resampled per call
    lo = float(sqrt_alphas_cumprod_prev[t - 1])
    hi = float(sqrt_alphas_cumprod_prev[t])
    k_a, k_noise = jax.random.split(key, 2)
    a = lo + (hi - lo) * jax.random.uniform(k_a, (B,), dtype=jnp.float32)
    sig = jnp.sqrt(1.0 - a * a)                      # a <= 1 by construction

    # ----- layout glue: NCHW -> channels-major (B, C, HW), HW on lanes -----
    flat = lambda x: x.reshape(B, C, HW).astype(jnp.float32)
    hr = flat(HR)
    lr1 = flat(x_in["LR1"])
    lr2 = flat(x_in["LR2"])
    lr3 = flat(x_in["LR3"])
    # TODO(synk): noise could be generated in-kernel (pltpu.prng_*) to save
    # one HBM round-trip, but that changes the RNG stream vs jax.random.
    noise = jax.random.normal(k_noise, (B, C, HW), jnp.float32)

    # ----- per-batch effective weights (algebraic fold, tiny host-side XLA) --
    w1a = params["w1"][:, :C]                        # (Hd, C)
    w1b = params["w1"][:, C:]                        # (Hd, C)
    a3 = a[:, None, None]
    s3 = sig[:, None, None]
    A = w1a[None] - a3 * w1b[None]                   # (B, Hd, C)
    w_lr = jnp.einsum("bhc,ck->bhk", A, params["wm"])        # (B, Hd, 3C)
    w_lr1, w_lr2, w_lr3 = w_lr[:, :, :C], w_lr[:, :, C:2 * C], w_lr[:, :, 2 * C:]
    w_hr = a3 * w1b[None]                            # (B, Hd, C)
    w_nz = s3 * w1b[None]                            # (B, Hd, C)
    b_eff = (jnp.einsum("bhc,c->bh", A, params["bm"])
             + params["b1"][None, :, 0]
             + a[:, None] * params["wt"][None, :, 0])[..., None]   # (B, Hd, 1)
    w2 = params["w2"]                                # (C, Hd)
    b2 = params["b2"].reshape(C, 1)                  # (C, 1)

    # ----- pixel-axis tiling: biggest lane-dense block that fits VMEM --------
    if tile_hw is None:
        tile_hw = HW                                  # whole pixel axis
        if HW > 16384:                                # ~0.2 MiB/input at f32
            tile_hw = 128
            for cand in (16384, 8192, 4096, 2048, 1024, 512, 256, 128):
                if HW % cand == 0:
                    tile_hw = cand
                    break
    assert HW % tile_hw == 0, "tile_hw must divide H*W"
    T = tile_hw
    n_tiles = HW // T

    img_spec = pl.BlockSpec((1, C, T), lambda b, ti: (b, 0, ti))
    wgt_spec = pl.BlockSpec((1, Hd, C), lambda b, ti: (b, 0, 0))

    grid_spec = pltpu.PrefetchScalarGridSpec(
        num_scalar_prefetch=0,
        grid=(B, n_tiles),
        in_specs=[
            img_spec, img_spec, img_spec, img_spec, img_spec,        # hr,lr1..3,noise
            wgt_spec, wgt_spec, wgt_spec, wgt_spec, wgt_spec,        # w_lr1..3,w_hr,w_nz
            pl.BlockSpec((1, Hd, 1), lambda b, ti: (b, 0, 0)),       # b_eff
            pl.BlockSpec((C, Hd), lambda b, ti: (0, 0)),             # w2
            pl.BlockSpec((C, 1), lambda b, ti: (0, 0)),              # b2
        ],
        out_specs=pl.BlockSpec((1, 1, 1, 128), lambda b, ti: (b, ti, 0, 0)),
    )

    partials = pl.pallas_call(
        diffusion_loss_kernel,
        out_shape=jax.ShapeDtypeStruct((B, n_tiles, 1, 128), jnp.float32),
        grid_spec=grid_spec,
        compiler_params=pltpu.CompilerParams(
            # per-block partial losses -> no cross-step dependency -> both grid
            # axes parallel (megacore sharding on v7x).
            dimension_semantics=("parallel", "parallel"),
            vmem_limit_bytes=32 * 1024 * 1024,
        ),
    )(hr, lr1, lr2, lr3, noise,
      w_lr1, w_lr2, w_lr3, w_hr, w_nz, b_eff, w2, b2)

    loss = jnp.sum(partials[:, :, 0, 0])
    return loss, (a, hr, lr1, lr2, lr3, noise)   # aux for the reference check


# ----------------------------------------------------------------------------
# Host-side float64 numpy reference of the *unfolded* computation.
# ----------------------------------------------------------------------------
def reference_loss_np(params, a, hr, lr1, lr2, lr3, noise):
    p = {k: np.asarray(v, np.float64) for k, v in params.items()}
    a = np.asarray(a, np.float64).reshape(-1, 1, 1)
    hr = np.asarray(hr, np.float64)
    lr = np.concatenate([np.asarray(lr1, np.float64),
                         np.asarray(lr2, np.float64),
                         np.asarray(lr3, np.float64)], axis=1)
    noise = np.asarray(noise, np.float64)

    cond = np.einsum("ok,bkt->bot", p["wm"], lr) + p["bm"][None, :, None]
    x_start = hr - cond
    x_noisy = a * x_start + np.sqrt(1.0 - a * a) * noise
    cat = np.concatenate([cond, x_noisy], axis=1)
    h = (np.einsum("ok,bkt->bot", p["w1"], cat)
         + p["b1"][None] + a * p["wt"][None])
    h = np.maximum(h, 0.0)
    recon = np.einsum("ok,bkt->bot", p["w2"], h) + p["b2"][None, :, None]
    return np.sum(np.abs(noise - recon))


if __name__ == "__main__":
    B, C, H, W = 2, 3, 16, 16
    Hd = 32

    key = jax.random.PRNGKey(0)
    ks = jax.random.split(key, 16)

    # deterministic inputs (small shapes consistent with the module)
    x_in = {
        "HR":  jax.random.normal(ks[0], (B, C, H, W), dtype=jnp.float32),
        "LR1": jax.random.normal(ks[1], (B, C, H, W), dtype=jnp.float32),
        "LR2": jax.random.normal(ks[2], (B, C, H, W), dtype=jnp.float32),
        "LR3": jax.random.normal(ks[3], (B, C, H, W), dtype=jnp.float32),
    }

    # deterministic synthetic parameters (MTA + denoise_fn stand-ins),
    # stored in natural [cout, cin] layouts.
    params = {
        "wm": 0.1 * jax.random.normal(ks[4], (C, 3 * C), dtype=jnp.float32),
        "bm": 0.1 * jax.random.normal(ks[5], (C,), dtype=jnp.float32),
        "w1": 0.1 * jax.random.normal(ks[6], (Hd, 2 * C), dtype=jnp.float32),
        "b1": 0.1 * jax.random.normal(ks[7], (Hd, 1), dtype=jnp.float32),
        "wt": 0.1 * jax.random.normal(ks[8], (Hd, 1), dtype=jnp.float32),
        "w2": 0.1 * jax.random.normal(ks[9], (C, Hd), dtype=jnp.float32),
        "b2": 0.1 * jax.random.normal(ks[10], (C,), dtype=jnp.float32),
    }

    loss, (a, hr_cm, lr1_cm, lr2_cm, lr3_cm, noise_cm) = gaussian_diffusion_forward(
        x_in, params, ks[12], n_timestep=32, rng=np.random.default_rng(1234)
    )
    loss = jax.block_until_ready(loss)

    ref = reference_loss_np(params, np.asarray(a), np.asarray(hr_cm),
                            np.asarray(lr1_cm), np.asarray(lr2_cm),
                            np.asarray(lr3_cm), np.asarray(noise_cm))
    np.testing.assert_allclose(np.asarray(loss), ref, rtol=1e-2, atol=0.5)

    print("KERNEL_OK")
</pallas_src>

<mosaic_0001>
module attributes {stable_mosaic.version = 11 : i64} {
  func.func @diffusion_loss_kernel(%arg0: i32, %arg1: i32, %arg2: memref<1x3x256xf32, #tpu.memory_space<vmem>>, %arg3: memref<1x3x256xf32, #tpu.memory_space<vmem>>, %arg4: memref<1x3x256xf32, #tpu.memory_space<vmem>>, %arg5: memref<1x3x256xf32, #tpu.memory_space<vmem>>, %arg6: memref<1x3x256xf32, #tpu.memory_space<vmem>>, %arg7: memref<1x32x3xf32, #tpu.memory_space<vmem>>, %arg8: memref<1x32x3xf32, #tpu.memory_space<vmem>>, %arg9: memref<1x32x3xf32, #tpu.memory_space<vmem>>, %arg10: memref<1x32x3xf32, #tpu.memory_space<vmem>>, %arg11: memref<1x32x3xf32, #tpu.memory_space<vmem>>, %arg12: memref<1x32x1xf32, #tpu.memory_space<vmem>>, %arg13: memref<3x32xf32, #tpu.memory_space<vmem>>, %arg14: memref<3x1xf32, #tpu.memory_space<vmem>>, %arg15: memref<1x1x1x128xf32, #tpu.memory_space<vmem>>) attributes {dimension_semantics = [#tpu.dimension_semantics<parallel>, #tpu.dimension_semantics<parallel>], iteration_bounds = array<i64: 2, 1>, scalar_prefetch = 0 : i64, scratch_operands = 0 : i64, tpu.core_type = #tpu.core_type<tc>, window_params = [{transform_indices = @transform_0, window_bounds = array<i64: 1, 3, 256>}, {transform_indices = @transform_1, window_bounds = array<i64: 1, 3, 256>}, {transform_indices = @transform_2, window_bounds = array<i64: 1, 3, 256>}, {transform_indices = @transform_3, window_bounds = array<i64: 1, 3, 256>}, {transform_indices = @transform_4, window_bounds = array<i64: 1, 3, 256>}, {transform_indices = @transform_5, window_bounds = array<i64: 1, 32, 3>}, {transform_indices = @transform_6, window_bounds = array<i64: 1, 32, 3>}, {transform_indices = @transform_7, window_bounds = array<i64: 1, 32, 3>}, {transform_indices = @transform_8, window_bounds = array<i64: 1, 32, 3>}, {transform_indices = @transform_9, window_bounds = array<i64: 1, 32, 3>}, {transform_indices = @transform_10, window_bounds = array<i64: 1, 32, 1>}, {pipeline_mode = #tpu.pipeline_mode<synchronous>, transform_indices = @transform_11, window_bounds = array<i64: 3, 32>}, {pipeline_mode = #tpu.pipeline_mode<synchronous>, transform_indices = @transform_12, window_bounds = array<i64: 3, 1>}, {transform_indices = @transform_13, window_bounds = array<i64: 1, 1, 1, 128>}]} {
    %c0 = arith.constant 0 : index
    %c0_0 = arith.constant 0 : index
    %c0_1 = arith.constant 0 : index
    %0 = vector.load %arg2[%c0, %c0_0, %c0_1] : memref<1x3x256xf32, #tpu.memory_space<vmem>>, vector<1x3x256xf32>
    %1 = vector.shape_cast %0 : vector<1x3x256xf32> to vector<3x256xf32>
    %c0_2 = arith.constant 0 : index
    %c0_3 = arith.constant 0 : index
    %c0_4 = arith.constant 0 : index
    %2 = vector.load %arg3[%c0_2, %c0_3, %c0_4] : memref<1x3x256xf32, #tpu.memory_space<vmem>>, vector<1x3x256xf32>
    %3 = vector.shape_cast %2 : vector<1x3x256xf32> to vector<3x256xf32>
    %c0_5 = arith.constant 0 : index
    %c0_6 = arith.constant 0 : index
    %c0_7 = arith.constant 0 : index
    %4 = vector.load %arg4[%c0_5, %c0_6, %c0_7] : memref<1x3x256xf32, #tpu.memory_space<vmem>>, vector<1x3x256xf32>
    %5 = vector.shape_cast %4 : vector<1x3x256xf32> to vector<3x256xf32>
    %c0_8 = arith.constant 0 : index
    %c0_9 = arith.constant 0 : index
    %c0_10 = arith.constant 0 : index
    %6 = vector.load %arg5[%c0_8, %c0_9, %c0_10] : memref<1x3x256xf32, #tpu.memory_space<vmem>>, vector<1x3x256xf32>
    %7 = vector.shape_cast %6 : vector<1x3x256xf32> to vector<3x256xf32>
    %c0_11 = arith.constant 0 : index
    %c0_12 = arith.constant 0 : index
    %c0_13 = arith.constant 0 : index
    %8 = vector.load %arg6[%c0_11, %c0_12, %c0_13] : memref<1x3x256xf32, #tpu.memory_space<vmem>>, vector<1x3x256xf32>
    %9 = vector.shape_cast %8 : vector<1x3x256xf32> to vector<3x256xf32>
    %c0_14 = arith.constant 0 : index
    %c0_15 = arith.constant 0 : index
    %c0_16 = arith.constant 0 : index
    %10 = vector.load %arg7[%c0_14, %c0_15, %c0_16] : memref<1x32x3xf32, #tpu.memory_space<vmem>>, vector<1x32x3xf32>
    %11 = vector.shape_cast %10 : vector<1x32x3xf32> to vector<32x3xf32>
    %cst = arith.constant dense<0.000000e+00> : vector<32x256xf32>
    %12 = tpu.matmul %11, %3, %cst {dimension_numbers = #tpu.dot_dimension_numbers<[1], [0], [0], [1], [0, 0, 1, 1], [], []>} : vector<32x3xf32>, vector<3x256xf32>, vector<32x256xf32> -> vector<32x256xf32>
    %c0_17 = arith.constant 0 : index
    %c0_18 = arith.constant 0 : index
    %c0_19 = arith.constant 0 : index
    %13 = vector.load %arg8[%c0_17, %c0_18, %c0_19] : memref<1x32x3xf32, #tpu.memory_space<vmem>>, vector<1x32x3xf32>
    %14 = vector.shape_cast %13 : vector<1x32x3xf32> to vector<32x3xf32>
    %cst_20 = arith.constant dense<0.000000e+00> : vector<32x256xf32>
    %15 = tpu.matmul %14, %5, %cst_20 {dimension_numbers = #tpu.dot_dimension_numbers<[1], [0], [0], [1], [0, 0, 1, 1], [], []>} : vector<32x3xf32>, vector<3x256xf32>, vector<32x256xf32> -> vector<32x256xf32>
    %16 = arith.addf %12, %15 : vector<32x256xf32>
    %c0_21 = arith.constant 0 : index
    %c0_22 = arith.constant 0 : index
    %c0_23 = arith.constant 0 : index
    %17 = vector.load %arg9[%c0_21, %c0_22, %c0_23] : memref<1x32x3xf32, #tpu.memory_space<vmem>>, vector<1x32x3xf32>
    %18 = vector.shape_cast %17 : vector<1x32x3xf32> to vector<32x3xf32>
    %cst_24 = arith.constant dense<0.000000e+00> : vector<32x256xf32>
    %19 = tpu.matmul %18, %7, %cst_24 {dimension_numbers = #tpu.dot_dimension_numbers<[1], [0], [0], [1], [0, 0, 1, 1], [], []>} : vector<32x3xf32>, vector<3x256xf32>, vector<32x256xf32> -> vector<32x256xf32>
    %20 = arith.addf %16, %19 : vector<32x256xf32>
    %c0_25 = arith.constant 0 : index
    %c0_26 = arith.constant 0 : index
    %c0_27 = arith.constant 0 : index
    %21 = vector.load %arg10[%c0_25, %c0_26, %c0_27] : memref<1x32x3xf32, #tpu.memory_space<vmem>>, vector<1x32x3xf32>
    %22 = vector.shape_cast %21 : vector<1x32x3xf32> to vector<32x3xf32>
    %cst_28 = arith.constant dense<0.000000e+00> : vector<32x256xf32>
    %23 = tpu.matmul %22, %1, %cst_28 {dimension_numbers = #tpu.dot_dimension_numbers<[1], [0], [0], [1], [0, 0, 1, 1], [], []>} : vector<32x3xf32>, vector<3x256xf32>, vector<32x256xf32> -> vector<32x256xf32>
    %24 = arith.addf %20, %23 : vector<32x256xf32>
    %c0_29 = arith.constant 0 : index
    %c0_30 = arith.constant 0 : index
    %c0_31 = arith.constant 0 : index
    %25 = vector.load %arg11[%c0_29, %c0_30, %c0_31] : memref<1x32x3xf32, #tpu.memory_space<vmem>>, vector<1x32x3xf32>
    %26 = vector.shape_cast %25 : vector<1x32x3xf32> to vector<32x3xf32>
    %cst_32 = arith.constant dense<0.000000e+00> : vector<32x256xf32>
    %27 = tpu.matmul %26, %9, %cst_32 {dimension_numbers = #tpu.dot_dimension_numbers<[1], [0], [0], [1], [0, 0, 1, 1], [], []>} : vector<32x3xf32>, vector<3x256xf32>, vector<32x256xf32> -> vector<32x256xf32>
    %28 = arith.addf %24, %27 : vector<32x256xf32>
    %c0_33 = arith.constant 0 : index
    %c0_34 = arith.constant 0 : index
    %c0_35 = arith.constant 0 : index
    %29 = vector.load %arg12[%c0_33, %c0_34, %c0_35] : memref<1x32x1xf32, #tpu.memory_space<vmem>>, vector<1x32x1xf32>
    %30 = vector.shape_cast %29 : vector<1x32x1xf32> to vector<32x1xf32>
    %31 = vector.broadcast %30 : vector<32x1xf32> to vector<32x256xf32>
    %32 = arith.addf %28, %31 : vector<32x256xf32>
    %cst_36 = arith.constant 0.000000e+00 : f32
    %33 = vector.broadcast %cst_36 : f32 to vector<32x256xf32>
    %34 = arith.maximumf %32, %33 : vector<32x256xf32>
    %c0_37 = arith.constant 0 : index
    %c0_38 = arith.constant 0 : index
    %35 = vector.load %arg13[%c0_37, %c0_38] : memref<3x32xf32, #tpu.memory_space<vmem>>, vector<3x32xf32>
    %cst_39 = arith.constant dense<0.000000e+00> : vector<3x256xf32>
    %36 = tpu.matmul %35, %34, %cst_39 {dimension_numbers = #tpu.dot_dimension_numbers<[1], [0], [0], [1], [0, 0, 1, 1], [], []>} : vector<3x32xf32>, vector<32x256xf32>, vector<3x256xf32> -> vector<3x256xf32>
    %c0_40 = arith.constant 0 : index
    %c0_41 = arith.constant 0 : index
    %37 = vector.load %arg14[%c0_40, %c0_41] : memref<3x1xf32, #tpu.memory_space<vmem>>, vector<3x1xf32>
    %38 = vector.broadcast %37 : vector<3x1xf32> to vector<3x256xf32>
    %39 = arith.addf %36, %38 : vector<3x256xf32>
    %40 = arith.subf %9, %39 : vector<3x256xf32>
    %41 = math.absf %40 : vector<3x256xf32>
    %42 = vector.shape_cast %41 : vector<3x256xf32> to vector<1x3x256xf32>
    %cst_42 = arith.constant dense<0.000000e+00> : vector<1xf32>
    %43 = vector.multi_reduction <add>, %42, %cst_42 [1, 2] : vector<1x3x256xf32> to vector<1xf32>
    %44 = vector.shape_cast %43 : vector<1xf32> to vector<1x1x1xf32>
    %45 = vector.extract %44[0, 0, 0] : f32 from vector<1x1x1xf32>
    %46 = vector.broadcast %45 : f32 to vector<1x1x1x128xf32>
    %c0_43 = arith.constant 0 : index
    %c0_44 = arith.constant 0 : index
    %c0_45 = arith.constant 0 : index
    %c0_46 = arith.constant 0 : index
    %47 = vector.load %arg15[%c0_43, %c0_44, %c0_45, %c0_46] : memref<1x1x1x128xf32, #tpu.memory_space<vmem>>, vector<1x1x1x128xf32>
    tpu.vector_store %arg15[%c0_43, %c0_44, %c0_45, %c0_46], %46 {strides = array<i32>} : memref<1x1x1x128xf32, #tpu.memory_space<vmem>>, vector<1x1x1x128xf32>,
    return
  }
  func.func @transform_0(%arg0: i32, %arg1: i32) -> (i32, i32, i32) {
    %c0_i32 = arith.constant 0 : i32
    %c0_i32_0 = arith.constant 0 : i32
    return %arg0, %c0_i32, %arg1 : i32, i32, i32
  }
  func.func @transform_1(%arg0: i32, %arg1: i32) -> (i32, i32, i32) {
    %c0_i32 = arith.constant 0 : i32
    %c0_i32_0 = arith.constant 0 : i32
    return %arg0, %c0_i32, %arg1 : i32, i32, i32
  }
  func.func @transform_2(%arg0: i32, %arg1: i32) -> (i32, i32, i32) {
    %c0_i32 = arith.constant 0 : i32
    %c0_i32_0 = arith.constant 0 : i32
    return %arg0, %c0_i32, %arg1 : i32, i32, i32
  }
  func.func @transform_3(%arg0: i32, %arg1: i32) -> (i32, i32, i32) {
    %c0_i32 = arith.constant 0 : i32
    %c0_i32_0 = arith.constant 0 : i32
    return %arg0, %c0_i32, %arg1 : i32, i32, i32
  }
  func.func @transform_4(%arg0: i32, %arg1: i32) -> (i32, i32, i32) {
    %c0_i32 = arith.constant 0 : i32
    %c0_i32_0 = arith.constant 0 : i32
    return %arg0, %c0_i32, %arg1 : i32, i32, i32
  }
  func.func @transform_5(%arg0: i32, %arg1: i32) -> (i32, i32, i32) {
    %c0_i32 = arith.constant 0 : i32
    %c0_i32_0 = arith.constant 0 : i32
    %c0_i32_1 = arith.constant 0 : i32
    return %arg0, %c0_i32, %c0_i32_0 : i32, i32, i32
  }
  func.func @transform_6(%arg0: i32, %arg1: i32) -> (i32, i32, i32) {
    %c0_i32 = arith.constant 0 : i32
    %c0_i32_0 = arith.constant 0 : i32
    %c0_i32_1 = arith.constant 0 : i32
    return %arg0, %c0_i32, %c0_i32_0 : i32, i32, i32
  }
  func.func @transform_7(%arg0: i32, %arg1: i32) -> (i32, i32, i32) {
    %c0_i32 = arith.constant 0 : i32
    %c0_i32_0 = arith.constant 0 : i32
    %c0_i32_1 = arith.constant 0 : i32
    return %arg0, %c0_i32, %c0_i32_0 : i32, i32, i32
  }
  func.func @transform_8(%arg0: i32, %arg1: i32) -> (i32, i32, i32) {
    %c0_i32 = arith.constant 0 : i32
    %c0_i32_0 = arith.constant 0 : i32
    %c0_i32_1 = arith.constant 0 : i32
    return %arg0, %c0_i32, %c0_i32_0 : i32, i32, i32
  }
  func.func @transform_9(%arg0: i32, %arg1: i32) -> (i32, i32, i32) {
    %c0_i32 = arith.constant 0 : i32
    %c0_i32_0 = arith.constant 0 : i32
    %c0_i32_1 = arith.constant 0 : i32
    return %arg0, %c0_i32, %c0_i32_0 : i32, i32, i32
  }
  func.func @transform_10(%arg0: i32, %arg1: i32) -> (i32, i32, i32) {
    %c0_i32 = arith.constant 0 : i32
    %c0_i32_0 = arith.constant 0 : i32
    %c0_i32_1 = arith.constant 0 : i32
    return %arg0, %c0_i32, %c0_i32_0 : i32, i32, i32
  }
  func.func @transform_11(%arg0: i32, %arg1: i32) -> (i32, i32) {
    %c0_i32 = arith.constant 0 : i32
    %c0_i32_0 = arith.constant 0 : i32
    %c0_i32_1 = arith.constant 0 : i32
    return %c0_i32, %c0_i32_0 : i32, i32
  }
  func.func @transform_12(%arg0: i32, %arg1: i32) -> (i32, i32) {
    %c0_i32 = arith.constant 0 : i32
    %c0_i32_0 = arith.constant 0 : i32
    %c0_i32_1 = arith.constant 0 : i32
    return %c0_i32, %c0_i32_0 : i32, i32
  }
  func.func @transform_13(%arg0: i32, %arg1: i32) -> (i32, i32, i32, i32) {
    %c0_i32 = arith.constant 0 : i32
    %c0_i32_0 = arith.constant 0 : i32
    %c0_i32_1 = arith.constant 0 : i32
    return %arg0, %arg1, %c0_i32, %c0_i32_0 : i32, i32, i32, i32
  }
}

</mosaic_0001>

<llo_original>
// kernel: tpu_custom_call.1
$region0: #{tpu_custom_call.1}
  #allocation0 [shape = 'u32[]', space=smem, size = 0x4, offset = 0x4, fixed_abs, tag = 'smem constant byte address 0x4 - core index']
  #allocation1 [shape = 'u32[144,128]{1,0:T(1,128)}', space=vmem, size = 0x12000, scoped, tag = 'internal scratch']
  %s0 = inlined_call_operand.vmem [shape: f32[2,3,256], index: 0, kind: input, shape index: {}]
  %s1 = inlined_call_operand.vmem [shape: f32[2,3,256], index: 1, kind: input, shape index: {}]
  %s2 = inlined_call_operand.vmem [shape: f32[2,3,256], index: 2, kind: input, shape index: {}]
  %s3 = inlined_call_operand.vmem [shape: f32[2,3,256], index: 3, kind: input, shape index: {}]
  %s4 = inlined_call_operand.vmem [shape: f32[2,3,256], index: 4, kind: input, shape index: {}]
  %s5 = inlined_call_operand.vmem [shape: f32[2,32,3], index: 5, kind: input, shape index: {}]
  %s6 = inlined_call_operand.vmem [shape: f32[2,32,3], index: 6, kind: input, shape index: {}]
  %s7 = inlined_call_operand.vmem [shape: f32[2,32,3], index: 7, kind: input, shape index: {}]
  %s8 = inlined_call_operand.vmem [shape: f32[2,32,3], index: 8, kind: input, shape index: {}]
  %s9 = inlined_call_operand.vmem [shape: f32[2,32,3], index: 9, kind: input, shape index: {}]
  %s10 = inlined_call_operand.vmem [shape: f32[2,32,1], index: 10, kind: input, shape index: {}]
  %s11 = inlined_call_operand.vmem [shape: f32[3,32], index: 11, kind: input, shape index: {}]
  %s12 = inlined_call_operand.vmem [shape: f32[3,1], index: 12, kind: input, shape index: {}]
  %s13 = inlined_call_operand.hbm [shape: f32[2,1,1,128], index: 13, kind: output, shape index: {}]
  %s14 = sld [smem:[#allocation0]]
  $region85: #{tpu_custom_call.1} parent=0
    _
  %s16 = ssub.s32 1, %s14
  %s17 = scalar_select 0, %s16, %s14
  $region1: #{tpu_custom_call.1} parent=0
    #allocation2 [shape = 'u8[1024]{0}', space=vmem, size = 0x400, scoped, tag = 'output window, operand 0']
    #allocation3 [shape = 's32[2]{0}', space=sflag, size = 0x8, scoped, tag = 'scoped memory for tpu_custom_call.1']
    %18 = vsyncpa [#allocation3], 0
    %s19 = scalar_lea.sflag [#allocation3], 1
    %20 = vsyncpa %s19, 0
    loop: start=0, step=1, limit=4
    $region2: #{tpu_custom_call.1} parent=1 // loop_pre_header
      _
    $region3: #{tpu_custom_call.1} parent=1 // loop_header
      %s22 = sphi 0, %s26
      %p23 = scmp.ge.s32.totalorder %s22, 4
      %s29 = sphi 0, %s41
      %s30 = sphi 0, %s37
      %s31 = sphi 0, %s29
      %s32 = sphi 0, %s30
      %s33 = sphi 0, %s31
      %s34 = sphi 0, %s32
      %s46 = sphi 0, %s48
      %s49 = sphi 0, %s46
      %s50 = sphi 0, %s49
      %s66 = sphi 0, %s50
      %s74 = sphi 0, %s76
      %s77 = sphi 0, %s74
      %s78 = sphi 0, %s77
      %s94 = sphi 0, %s78
      %s102 = sphi 0, %s104
      %s105 = sphi 0, %s102
      %s106 = sphi 0, %s105
      %s122 = sphi 0, %s106
      %s130 = sphi 0, %s132
      %s133 = sphi 0, %s130
      %s134 = sphi 0, %s133
      %s150 = sphi 0, %s134
      %s158 = sphi 0, %s160
      %s161 = sphi 0, %s158
      %s162 = sphi 0, %s161
      %s178 = sphi 0, %s162
      %s184 = sphi 0, %s186
      %s187 = sphi 0, %s184
      %s188 = sphi 0, %s187
      %s204 = sphi 0, %s188
      %s210 = sphi 0, %s212
      %s213 = sphi 0, %s210
      %s214 = sphi 0, %s213
      %s230 = sphi 0, %s214
      %s236 = sphi 0, %s238
      %s239 = sphi 0, %s236
      %s240 = sphi 0, %s239
      %s256 = sphi 0, %s240
      %s262 = sphi 0, %s264
      %s265 = sphi 0, %s262
      %s266 = sphi 0, %s265
      %s282 = sphi 0, %s266
      %s288 = sphi 0, %s290
      %s291 = sphi 0, %s288
      %s292 = sphi 0, %s291
      %s308 = sphi 0, %s292
      %s314 = sphi 0, %s316
      %s317 = sphi 0, %s314
      %s318 = sphi 0, %s317
      %s334 = sphi 0, %s318
      %s338 = sphi 0, %s338
      %s340 = sphi 0, %s338
      %s341 = sphi 0, %s340
      %s355 = sphi 0, %s341
      %s359 = sphi 0, %s359
      %s361 = sphi 0, %s359
      %s362 = sphi 0, %s361
      %s376 = sphi 0, %s362
      %s384 = sphi 0, %s386
      %s387 = sphi 0, %s384
      %s388 = sphi 0, %s387
      %s404 = sphi 0, %s388
    $region4: #{tpu_custom_call.1} parent=1 // loop_header_branch
      %25 = sbr.rel (%p23) target = $region8
    $region5: #{tpu_custom_call.1} parent=1 // loop_body
      %s27 = ssub.s32 %s22, 1
      %s28 = ssub.s32 %s22, 2
      %s35 = sadd.s32 1, %s30
      %p36 = scmp.ge.s32.totalorder %s35, 1
      %s37 = scalar_select %p36, 0, %s35
      %s38 = sadd.s32 1, %s29
      %s39 = scalar_select %p36, %s38, %s29
      %p40 = scmp.ge.s32.totalorder %s39, 2
      %s41 = scalar_select %p40, 0, %s39
      %s42 = ssub.s32 %s29, %s41
      %s43 = ssub.s32 %s30, %s37
      %s44 = sor.u32 %s42, %s43
      %p45 = scmp.eq.s32.totalorder %s44, 0
      %s47 = sadd.s32 %s46, 1
      %s48 = scalar_select %p45, %s46, %s47
      %p51 = pneg %p45
      %p52 = scmp.eq.s32.totalorder %s22, 1
      %p53 = por %p51, %p52
      %p54 = scmp.ne.s32.totalorder %s46, %s49
      %p55 = scmp.eq.s32.totalorder %s22, 0
      %p56 = por %p54, %p55
      %p57 = scmp.ne.s32.totalorder %s46, %s49
      %p58 = scmp.eq.s32.totalorder %s27, 1
      %p59 = por %p57, %p58
      %p60 = scmp.ne.s32.totalorder %s49, %s50
      %p61 = scmp.eq.s32.totalorder %s27, 0
      %p62 = por %p60, %p61
      %p63 = scmp.ne.s32.totalorder %s49, %s50
      %p64 = scmp.eq.s32.totalorder %s28, 1
      %p65 = por %p63, %p64
      %p67 = scmp.ne.s32.totalorder %s50, %s66
      %p68 = scmp.eq.s32.totalorder %s28, 0
      %p69 = por %p67, %p68
      %s70 = ssub.s32 %s29, %s41
      %s71 = ssub.s32 %s30, %s37
      %s72 = sor.u32 %s70, %s71
      %p73 = scmp.eq.s32.totalorder %s72, 0
      %s75 = sadd.s32 %s74, 1
      %s76 = scalar_select %p73, %s74, %s75
      %p79 = pneg %p73
      %p80 = scmp.eq.s32.totalorder %s22, 1
      %p81 = por %p79, %p80
      %p82 = scmp.ne.s32.totalorder %s74, %s77
      %p83 = scmp.eq.s32.totalorder %s22, 0
      %p84 = por %p82, %p83
      %p85 = scmp.ne.s32.totalorder %s74, %s77
      %p86 = scmp.eq.s32.totalorder %s27, 1
      %p87 = por %p85, %p86
      %p88 = scmp.ne.s32.totalorder %s77, %s78
      %p89 = scmp.eq.s32.totalorder %s27, 0
      %p90 = por %p88, %p89
      %p91 = scmp.ne.s32.totalorder %s77, %s78
      %p92 = scmp.eq.s32.totalorder %s28, 1
      %p93 = por %p91, %p92
      %p95 = scmp.ne.s32.totalorder %s78, %s94
      %p96 = scmp.eq.s32.totalorder %s28, 0
      %p97 = por %p95, %p96
      %s98 = ssub.s32 %s29, %s41
      %s99 = ssub.s32 %s30, %s37
      %s100 = sor.u32 %s98, %s99
      %p101 = scmp.eq.s32.totalorder %s100, 0
      %s103 = sadd.s32 %s102, 1
      %s104 = scalar_select %p101, %s102, %s103
      %p107 = pneg %p101
      %p108 = scmp.eq.s32.totalorder %s22, 1
      %p109 = por %p107, %p108
      %p110 = scmp.ne.s32.totalorder %s102, %s105
      %p111 = scmp.eq.s32.totalorder %s22, 0
      %p112 = por %p110, %p111
      %p113 = scmp.ne.s32.totalorder %s102, %s105
      %p114 = scmp.eq.s32.totalorder %s27, 1
      %p115 = por %p113, %p114
      %p116 = scmp.ne.s32.totalorder %s105, %s106
      %p117 = scmp.eq.s32.totalorder %s27, 0
      %p118 = por %p116, %p117
      %p119 = scmp.ne.s32.totalorder %s105, %s106
      %p120 = scmp.eq.s32.totalorder %s28, 1
      %p121 = por %p119, %p120
      %p123 = scmp.ne.s32.totalorder %s106, %s122
      %p124 = scmp.eq.s32.totalorder %s28, 0
      %p125 = por %p123, %p124
      %s126 = ssub.s32 %s29, %s41
      %s127 = ssub.s32 %s30, %s37
      %s128 = sor.u32 %s126, %s127
      %p129 = scmp.eq.s32.totalorder %s128, 0
      %s131 = sadd.s32 %s130, 1
      %s132 = scalar_select %p129, %s130, %s131
      %p135 = pneg %p129
      %p136 = scmp.eq.s32.totalorder %s22, 1
      %p137 = por %p135, %p136
      %p138 = scmp.ne.s32.totalorder %s130, %s133
      %p139 = scmp.eq.s32.totalorder %s22, 0
      %p140 = por %p138, %p139
      %p141 = scmp.ne.s32.totalorder %s130, %s133
      %p142 = scmp.eq.s32.totalorder %s27, 1
      %p143 = por %p141, %p142
      %p144 = scmp.ne.s32.totalorder %s133, %s134
      %p145 = scmp.eq.s32.totalorder %s27, 0
      %p146 = por %p144, %p145
      %p147 = scmp.ne.s32.totalorder %s133, %s134
      %p148 = scmp.eq.s32.totalorder %s28, 1
      %p149 = por %p147, %p148
      %p151 = scmp.ne.s32.totalorder %s134, %s150
      %p152 = scmp.eq.s32.totalorder %s28, 0
      %p153 = por %p151, %p152
      %s154 = ssub.s32 %s29, %s41
      %s155 = ssub.s32 %s30, %s37
      %s156 = sor.u32 %s154, %s155
      %p157 = scmp.eq.s32.totalorder %s156, 0
      %s159 = sadd.s32 %s158, 1
      %s160 = scalar_select %p157, %s158, %s159
      %p163 = pneg %p157
      %p164 = scmp.eq.s32.totalorder %s22, 1
      %p165 = por %p163, %p164
      %p166 = scmp.ne.s32.totalorder %s158, %s161
      %p167 = scmp.eq.s32.totalorder %s22, 0
      %p168 = por %p166, %p167
      %p169 = scmp.ne.s32.totalorder %s158, %s161
      %p170 = scmp.eq.s32.totalorder %s27, 1
      %p171 = por %p169, %p170
      %p172 = scmp.ne.s32.totalorder %s161, %s162
      %p173 = scmp.eq.s32.totalorder %s27, 0
      %p174 = por %p172, %p173
      %p175 = scmp.ne.s32.totalorder %s161, %s162
      %p176 = scmp.eq.s32.totalorder %s28, 1
      %p177 = por %p175, %p176
      %p179 = scmp.ne.s32.totalorder %s162, %s178
      %p180 = scmp.eq.s32.totalorder %s28, 0
      %p181 = por %p179, %p180
      %s182 = ssub.s32 %s29, %s41
      %p183 = scmp.eq.s32.totalorder %s182, 0
      %s185 = sadd.s32 %s184, 1
      %s186 = scalar_select %p183, %s184, %s185
      %p189 = pneg %p183
      %p190 = scmp.eq.s32.totalorder %s22, 1
      %p191 = por %p189, %p190
      %p192 = scmp.ne.s32.totalorder %s184, %s187
      %p193 = scmp.eq.s32.totalorder %s22, 0
      %p194 = por %p192, %p193
      %p195 = scmp.ne.s32.totalorder %s184, %s187
      %p196 = scmp.eq.s32.totalorder %s27, 1
      %p197 = por %p195, %p196
      %p198 = scmp.ne.s32.totalorder %s187, %s188
      %p199 = scmp.eq.s32.totalorder %s27, 0
      %p200 = por %p198, %p199
      %p201 = scmp.ne.s32.totalorder %s187, %s188
      %p202 = scmp.eq.s32.totalorder %s28, 1
      %p203 = por %p201, %p202
      %p205 = scmp.ne.s32.totalorder %s188, %s204
      %p206 = scmp.eq.s32.totalorder %s28, 0
      %p207 = por %p205, %p206
      %s208 = ssub.s32 %s29, %s41
      %p209 = scmp.eq.s32.totalorder %s208, 0
      %s211 = sadd.s32 %s210, 1
      %s212 = scalar_select %p209, %s210, %s211
      %p215 = pneg %p209
      %p216 = scmp.eq.s32.totalorder %s22, 1
      %p217 = por %p215, %p216
      %p218 = scmp.ne.s32.totalorder %s210, %s213
      %p219 = scmp.eq.s32.totalorder %s22, 0
      %p220 = por %p218, %p219
      %p221 = scmp.ne.s32.totalorder %s210, %s213
      %p222 = scmp.eq.s32.totalorder %s27, 1
      %p223 = por %p221, %p222
      %p224 = scmp.ne.s32.totalorder %s213, %s214
      %p225 = scmp.eq.s32.totalorder %s27, 0
      %p226 = por %p224, %p225
      %p227 = scmp.ne.s32.totalorder %s213, %s214
      %p228 = scmp.eq.s32.totalorder %s28, 1
      %p229 = por %p227, %p228
      %p231 = scmp.ne.s32.totalorder %s214, %s230
      %p232 = scmp.eq.s32.totalorder %s28, 0
      %p233 = por %p231, %p232
      %s234 = ssub.s32 %s29, %s41
      %p235 = scmp.eq.s32.totalorder %s234, 0
      %s237 = sadd.s32 %s236, 1
      %s238 = scalar_select %p235, %s236, %s237
      %p241 = pneg %p235
      %p242 = scmp.eq.s32.totalorder %s22, 1
      %p243 = por %p241, %p242
      %p244 = scmp.ne.s32.totalorder %s236, %s239
      %p245 = scmp.eq.s32.totalorder %s22, 0
      %p246 = por %p244, %p245
      %p247 = scmp.ne.s32.totalorder %s236, %s239
      %p248 = scmp.eq.s32.totalorder %s27, 1
      %p249 = por %p247, %p248
      %p250 = scmp.ne.s32.totalorder %s239, %s240
      %p251 = scmp.eq.s32.totalorder %s27, 0
      %p252 = por %p250, %p251
      %p253 = scmp.ne.s32.totalorder %s239, %s240
      %p254 = scmp.eq.s32.totalorder %s28, 1
      %p255 = por %p253, %p254
      %p257 = scmp.ne.s32.totalorder %s240, %s256
      %p258 = scmp.eq.s32.totalorder %s28, 0
      %p259 = por %p257, %p258
      %s260 = ssub.s32 %s29, %s41
      %p261 = scmp.eq.s32.totalorder %s260, 0
      %s263 = sadd.s32 %s262, 1
      %s264 = scalar_select %p261, %s262, %s263
      %p267 = pneg %p261
      %p268 = scmp.eq.s32.totalorder %s22, 1
      %p269 = por %p267, %p268
      %p270 = scmp.ne.s32.totalorder %s262, %s265
      %p271 = scmp.eq.s32.totalorder %s22, 0
      %p272 = por %p270, %p271
      %p273 = scmp.ne.s32.totalorder %s262, %s265
      %p274 = scmp.eq.s32.totalorder %s27, 1
      %p275 = por %p273, %p274
      %p276 = scmp.ne.s32.totalorder %s265, %s266
      %p277 = scmp.eq.s32.totalorder %s27, 0
      %p278 = por %p276, %p277
      %p279 = scmp.ne.s32.totalorder %s265, %s266
      %p280 = scmp.eq.s32.totalorder %s28, 1
      %p281 = por %p279, %p280
      %p283 = scmp.ne.s32.totalorder %s266, %s282
      %p284 = scmp.eq.s32.totalorder %s28, 0
      %p285 = por %p283, %p284
      %s286 = ssub.s32 %s29, %s41
      %p287 = scmp.eq.s32.totalorder %s286, 0
      %s289 = sadd.s32 %s288, 1
      %s290 = scalar_select %p287, %s288, %s289
      %p293 = pneg %p287
      %p294 = scmp.eq.s32.totalorder %s22, 1
      %p295 = por %p293, %p294
      %p296 = scmp.ne.s32.totalorder %s288, %s291
      %p297 = scmp.eq.s32.totalorder %s22, 0
      %p298 = por %p296, %p297
      %p299 = scmp.ne.s32.totalorder %s288, %s291
      %p300 = scmp.eq.s32.totalorder %s27, 1
      %p301 = por %p299, %p300
      %p302 = scmp.ne.s32.totalorder %s291, %s292
      %p303 = scmp.eq.s32.totalorder %s27, 0
      %p304 = por %p302, %p303
      %p305 = scmp.ne.s32.totalorder %s291, %s292
      %p306 = scmp.eq.s32.totalorder %s28, 1
      %p307 = por %p305, %p306
      %p309 = scmp.ne.s32.totalorder %s292, %s308
      %p310 = scmp.eq.s32.totalorder %s28, 0
      %p311 = por %p309, %p310
      %s312 = ssub.s32 %s29, %s41
      %p313 = scmp.eq.s32.totalorder %s312, 0
      %s315 = sadd.s32 %s314, 1
      %s316 = scalar_select %p313, %s314, %s315
      %p319 = pneg %p313
      %p320 = scmp.eq.s32.totalorder %s22, 1
      %p321 = por %p319, %p320
      %p322 = scmp.ne.s32.totalorder %s314, %s317
      %p323 = scmp.eq.s32.totalorder %s22, 0
      %p324 = por %p322, %p323
      %p325 = scmp.ne.s32.totalorder %s314, %s317
      %p326 = scmp.eq.s32.totalorder %s27, 1
      %p327 = por %p325, %p326
      %p328 = scmp.ne.s32.totalorder %s317, %s318
      %p329 = scmp.eq.s32.totalorder %s27, 0
      %p330 = por %p328, %p329
      %p331 = scmp.ne.s32.totalorder %s317, %s318
      %p332 = scmp.eq.s32.totalorder %s28, 1
      %p333 = por %p331, %p332
      %p335 = scmp.ne.s32.totalorder %s318, %s334
      %p336 = scmp.eq.s32.totalorder %s28, 0
      %p337 = por %p335, %p336
      %s339 = sadd.s32 %s338, 1
      %p342 = scmp.eq.s32.totalorder %s22, 1
      %p343 = scmp.ne.s32.totalorder %s338, %s340
      %p344 = scmp.eq.s32.totalorder %s22, 0
      %p345 = por %p343, %p344
      %p346 = scmp.ne.s32.totalorder %s338, %s340
      %p347 = scmp.eq.s32.totalorder %s27, 1
      %p348 = por %p346, %p347
      %p349 = scmp.ne.s32.totalorder %s340, %s341
      %p350 = scmp.eq.s32.totalorder %s27, 0
      %p351 = por %p349, %p350
      %p352 = scmp.ne.s32.totalorder %s340, %s341
      %p353 = scmp.eq.s32.totalorder %s28, 1
      %p354 = por %p352, %p353
      %p356 = scmp.ne.s32.totalorder %s341, %s355
      %p357 = scmp.eq.s32.totalorder %s28, 0
      %p358 = por %p356, %p357
      %s360 = sadd.s32 %s359, 1
      %p363 = scmp.eq.s32.totalorder %s22, 1
      %p364 = scmp.ne.s32.totalorder %s359, %s361
      %p365 = scmp.eq.s32.totalorder %s22, 0
      %p366 = por %p364, %p365
      %p367 = scmp.ne.s32.totalorder %s359, %s361
      %p368 = scmp.eq.s32.totalorder %s27, 1
      %p369 = por %p367, %p368
      %p370 = scmp.ne.s32.totalorder %s361, %s362
      %p371 = scmp.eq.s32.totalorder %s27, 0
      %p372 = por %p370, %p371
      %p373 = scmp.ne.s32.totalorder %s361, %s362
      %p374 = scmp.eq.s32.totalorder %s28, 1
      %p375 = por %p373, %p374
      %p377 = scmp.ne.s32.totalorder %s362, %s376
      %p378 = scmp.eq.s32.totalorder %s28, 0
      %p379 = por %p377, %p378
      %s380 = ssub.s32 %s29, %s41
      %s381 = ssub.s32 %s30, %s37
      %s382 = sor.u32 %s380, %s381
      %p383 = scmp.eq.s32.totalorder %s382, 0
      %s385 = sadd.s32 %s384, 1
      %s386 = scalar_select %p383, %s384, %s385
      %p389 = pneg %p383
      %p390 = scmp.eq.s32.totalorder %s22, 1
      %p391 = por %p389, %p390
      %p392 = scmp.ne.s32.totalorder %s384, %s387
      %p393 = scmp.eq.s32.totalorder %s22, 0
      %p394 = por %p392, %p393
      %p395 = scmp.ne.s32.totalorder %s384, %s387
      %p396 = scmp.eq.s32.totalorder %s27, 1
      %p397 = por %p395, %p396
      %p398 = scmp.ne.s32.totalorder %s387, %s388
      %p399 = scmp.eq.s32.totalorder %s27, 0
      %p400 = por %p398, %p399
      %p401 = scmp.ne.s32.totalorder %s387, %s388
      %p402 = scmp.eq.s32.totalorder %s28, 1
      %p403 = por %p401, %p402
      %p405 = scmp.ne.s32.totalorder %s388, %s404
      %p406 = scmp.eq.s32.totalorder %s28, 0
      %p407 = por %p405, %p406
      %p408 = scmp.le.s32.totalorder 1, %s22
      %p409 = scmp.lt.s32.totalorder %s22, 3
      %p410 = pnand %p408, %p409
      %p411 = pneg %p410
      // Predicated region
      $region9: #{tpu_custom_call.1} parent=5 // pred_check
        _
      $region10: #{tpu_custom_call.1} parent=5 // pred_check_branch
        %413 = sbr.rel (%p410) target = $region12
      $region11: #{tpu_custom_call.1} parent=5 // pred_region
        %s414 = ssub.s32 %s22, 1
        // Predicated region
        $region13: #{tpu_custom_call.1} parent=11 // pred_check
          %p415 = pneg %p351
        $region14: #{tpu_custom_call.1} parent=11 // pred_check_branch
          %417 = sbr.rel (%p415) target = $region16
        $region15: #{tpu_custom_call.1} parent=11 // pred_region
          _
        $region16: #{tpu_custom_call.1} parent=11 // pred_fallthru
          _
        // Predicated region
        $region17: #{tpu_custom_call.1} parent=11 // pred_check
          %p418 = pneg %p372
        $region18: #{tpu_custom_call.1} parent=11 // pred_check_branch
          %420 = sbr.rel (%p418) target = $region20
        $region19: #{tpu_custom_call.1} parent=11 // pred_region
          _
        $region20: #{tpu_custom_call.1} parent=11 // pred_fallthru
          _
      $region12: #{tpu_custom_call.1} parent=5 // pred_fallthru
        _
      %p421 = scmp.lt.s32.totalorder %s22, 2
      // Predicated region
      $region21: #{tpu_custom_call.1} parent=5 // pred_check
        %p422 = pneg %p421
      $region22: #{tpu_custom_call.1} parent=5 // pred_check_branch
        %424 = sbr.rel (%p422) target = $region24
      $region23: #{tpu_custom_call.1} parent=5 // pred_region
        // Predicated region
        $region25: #{tpu_custom_call.1} parent=23 // pred_check
          %p425 = pneg %p56
        $region26: #{tpu_custom_call.1} parent=23 // pred_check_branch
          %427 = sbr.rel (%p425) target = $region28
        $region27: #{tpu_custom_call.1} parent=23 // pred_region
          %s428 = smul.u32 2, %s30
          %p429 = scmp.lt.s32.totalorder %s29, 1
          %s430 = scalar_select %p429, %s29, 1
          %p431 = scmp.lt.s32.totalorder %s428, 1
          %s432 = scalar_select %p431, %s428, 1
          %s433 = smul.addr %s430, 2
          %s434 = sadd.s32 %s432, %s433
          %s435 = smul.addr %s434, 4
          %s436 = scalar_lea.vmem %s0, %s435
          %s437 = smul.u32 2, %s30
        $region28: #{tpu_custom_call.1} parent=23 // pred_fallthru
          _
        // Predicated region
        $region29: #{tpu_custom_call.1} parent=23 // pred_check
          %p438 = pneg %p84
        $region30: #{tpu_custom_call.1} parent=23 // pred_check_branch
          %440 = sbr.rel (%p438) target = $region32
        $region31: #{tpu_custom_call.1} parent=23 // pred_region
          %s441 = smul.u32 2, %s30
          %p442 = scmp.lt.s32.totalorder %s29, 1
          %s443 = scalar_select %p442, %s29, 1
          %p444 = scmp.lt.s32.totalorder %s441, 1
          %s445 = scalar_select %p444, %s441, 1
          %s446 = smul.addr %s443, 2
          %s447 = sadd.s32 %s445, %s446
          %s448 = smul.addr %s447, 4
          %s449 = scalar_lea.vmem %s1, %s448
          %s450 = smul.u32 2, %s30
        $region32: #{tpu_custom_call.1} parent=23 // pred_fallthru
          _
        // Predicated region
        $region33: #{tpu_custom_call.1} parent=23 // pred_check
          %p451 = pneg %p112
        $region34: #{tpu_custom_call.1} parent=23 // pred_check_branch
          %453 = sbr.rel (%p451) target = $region36
        $region35: #{tpu_custom_call.1} parent=23 // pred_region
          %s454 = smul.u32 2, %s30
          %p455 = scmp.lt.s32.totalorder %s29, 1
          %s456 = scalar_select %p455, %s29, 1
          %p457 = scmp.lt.s32.totalorder %s454, 1
          %s458 = scalar_select %p457, %s454, 1
          %s459 = smul.addr %s456, 2
          %s460 = sadd.s32 %s458, %s459
          %s461 = smul.addr %s460, 4
          %s462 = scalar_lea.vmem %s2, %s461
          %s463 = smul.u32 2, %s30
        $region36: #{tpu_custom_call.1} parent=23 // pred_fallthru
          _
        // Predicated region
        $region37: #{tpu_custom_call.1} parent=23 // pred_check
          %p464 = pneg %p140
        $region38: #{tpu_custom_call.1} parent=23 // pred_check_branch
          %466 = sbr.rel (%p464) target = $region40
        $region39: #{tpu_custom_call.1} parent=23 // pred_region
          %s467 = smul.u32 2, %s30
          %p468 = scmp.lt.s32.totalorder %s29, 1
          %s469 = scalar_select %p468, %s29, 1
          %p470 = scmp.lt.s32.totalorder %s467, 1
          %s471 = scalar_select %p470, %s467, 1
          %s472 = smul.addr %s469, 2
          %s473 = sadd.s32 %s471, %s472
          %s474 = smul.addr %s473, 4
          %s475 = scalar_lea.vmem %s3, %s474
          %s476 = smul.u32 2, %s30
        $region40: #{tpu_custom_call.1} parent=23 // pred_fallthru
          _
        // Predicated region
        $region41: #{tpu_custom_call.1} parent=23 // pred_check
          %p477 = pneg %p168
        $region42: #{tpu_custom_call.1} parent=23 // pred_check_branch
          %479 = sbr.rel (%p477) target = $region44
        $region43: #{tpu_custom_call.1} parent=23 // pred_region
          %s480 = smul.u32 2, %s30
          %p481 = scmp.lt.s32.totalorder %s29, 1
          %s482 = scalar_select %p481, %s29, 1
          %p483 = scmp.lt.s32.totalorder %s480, 1
          %s484 = scalar_select %p483, %s480, 1
          %s485 = smul.addr %s482, 2
          %s486 = sadd.s32 %s484, %s485
          %s487 = smul.addr %s486, 4
          %s488 = scalar_lea.vmem %s4, %s487
          %s489 = smul.u32 2, %s30
        $region44: #{tpu_custom_call.1} parent=23 // pred_fallthru
          _
        // Predicated region
        $region45: #{tpu_custom_call.1} parent=23 // pred_check
          %p490 = pneg %p194
        $region46: #{tpu_custom_call.1} parent=23 // pred_check_branch
          %492 = sbr.rel (%p490) target = $region48
        $region47: #{tpu_custom_call.1} parent=23 // pred_region
          %p493 = scmp.lt.s32.totalorder %s29, 1
          %s494 = scalar_select %p493, %s29, 1
          %s495 = smul.addr %s494, 4
          %s496 = smul.addr %s495, 8
          %s497 = scalar_lea.vmem %s5, %s496
        $region48: #{tpu_custom_call.1} parent=23 // pred_fallthru
          _
        // Predicated region
        $region49: #{tpu_custom_call.1} parent=23 // pred_check
          %p498 = pneg %p220
        $region50: #{tpu_custom_call.1} parent=23 // pred_check_branch
          %500 = sbr.rel (%p498) target = $region52
        $region51: #{tpu_custom_call.1} parent=23 // pred_region
          %p501 = scmp.lt.s32.totalorder %s29, 1
          %s502 = scalar_select %p501, %s29, 1
          %s503 = smul.addr %s502, 4
          %s504 = smul.addr %s503, 8
          %s505 = scalar_lea.vmem %s6, %s504
        $region52: #{tpu_custom_call.1} parent=23 // pred_fallthru
          _
        // Predicated region
        $region53: #{tpu_custom_call.1} parent=23 // pred_check
          %p506 = pneg %p246
        $region54: #{tpu_custom_call.1} parent=23 // pred_check_branch
          %508 = sbr.rel (%p506) target = $region56
        $region55: #{tpu_custom_call.1} parent=23 // pred_region
          %p509 = scmp.lt.s32.totalorder %s29, 1
          %s510 = scalar_select %p509, %s29, 1
          %s511 = smul.addr %s510, 4
          %s512 = smul.addr %s511, 8
          %s513 = scalar_lea.vmem %s7, %s512
        $region56: #{tpu_custom_call.1} parent=23 // pred_fallthru
          _
        // Predicated region
        $region57: #{tpu_custom_call.1} parent=23 // pred_check
          %p514 = pneg %p272
        $region58: #{tpu_custom_call.1} parent=23 // pred_check_branch
          %516 = sbr.rel (%p514) target = $region60
        $region59: #{tpu_custom_call.1} parent=23 // pred_region
          %p517 = scmp.lt.s32.totalorder %s29, 1
          %s518 = scalar_select %p517, %s29, 1
          %s519 = smul.addr %s518, 4
          %s520 = smul.addr %s519, 8
          %s521 = scalar_lea.vmem %s8, %s520
        $region60: #{tpu_custom_call.1} parent=23 // pred_fallthru
          _
        // Predicated region
        $region61: #{tpu_custom_call.1} parent=23 // pred_check
          %p522 = pneg %p298
        $region62: #{tpu_custom_call.1} parent=23 // pred_check_branch
          %524 = sbr.rel (%p522) target = $region64
        $region63: #{tpu_custom_call.1} parent=23 // pred_region
          %p525 = scmp.lt.s32.totalorder %s29, 1
          %s526 = scalar_select %p525, %s29, 1
          %s527 = smul.addr %s526, 4
          %s528 = smul.addr %s527, 8
          %s529 = scalar_lea.vmem %s9, %s528
        $region64: #{tpu_custom_call.1} parent=23 // pred_fallthru
          _
        // Predicated region
        $region65: #{tpu_custom_call.1} parent=23 // pred_check
          %p530 = pneg %p324
        $region66: #{tpu_custom_call.1} parent=23 // pred_check_branch
          %532 = sbr.rel (%p530) target = $region68
        $region67: #{tpu_custom_call.1} parent=23 // pred_region
          %p533 = scmp.lt.s32.totalorder %s29, 1
          %s534 = scalar_select %p533, %s29, 1
          %s535 = smul.addr %s534, 4
          %s536 = smul.addr %s535, 8
          %s537 = scalar_lea.vmem %s10, %s536
        $region68: #{tpu_custom_call.1} parent=23 // pred_fallthru
          _
      $region24: #{tpu_custom_call.1} parent=5 // pred_fallthru
        _
      %p538 = scmp.le.s32.totalorder 1, %s22
      %p539 = scmp.lt.s32.totalorder %s22, 3
      %p540 = pnand %p538, %p539
      %p541 = pneg %p540
      // Predicated region
      $region69: #{tpu_custom_call.1} parent=5 // pred_check
        _
      $region70: #{tpu_custom_call.1} parent=5 // pred_check_branch
        %543 = sbr.rel (%p540) target = $region72
      $region71: #{tpu_custom_call.1} parent=5 // pred_region
        %s544 = ssub.s32 %s22, 1
        %s545 = smul.u32 2, %s32
        %p546 = scmp.lt.s32.totalorder %s31, 1
        %s547 = scalar_select %p546, %s31, 1
        %p548 = scmp.lt.s32.totalorder %s545, 1
        %s549 = scalar_select %p548, %s545, 1
        %s550 = smul.addr %s547, 2
        %s551 = sadd.s32 %s549, %s550
        %s552 = smul.addr %s551, 4
        %s553 = scalar_lea.vmem %s0, %s552
        %p554 = pneg %p62
        %p555 = pneg %p59
        %s556 = smul.u32 2, %s32
        %p557 = scmp.lt.s32.totalorder %s31, 1
        %s558 = scalar_select %p557, %s31, 1
        %p559 = scmp.lt.s32.totalorder %s556, 1
        %s560 = scalar_select %p559, %s556, 1
        %s561 = smul.addr %s558, 2
        %s562 = sadd.s32 %s560, %s561
        %s563 = smul.addr %s562, 4
        %s564 = scalar_lea.vmem %s1, %s563
        %p565 = pneg %p90
        %p566 = pneg %p87
        %s567 = smul.u32 2, %s32
        %p568 = scmp.lt.s32.totalorder %s31, 1
        %s569 = scalar_select %p568, %s31, 1
        %p570 = scmp.lt.s32.totalorder %s567, 1
        %s571 = scalar_select %p570, %s567, 1
        %s572 = smul.addr %s569, 2
        %s573 = sadd.s32 %s571, %s572
        %s574 = smul.addr %s573, 4
        %s575 = scalar_lea.vmem %s2, %s574
        %p576 = pneg %p118
        %p577 = pneg %p115
        %s578 = smul.u32 2, %s32
        %p579 = scmp.lt.s32.totalorder %s31, 1
        %s580 = scalar_select %p579, %s31, 1
        %p581 = scmp.lt.s32.totalorder %s578, 1
        %s582 = scalar_select %p581, %s578, 1
        %s583 = smul.addr %s580, 2
        %s584 = sadd.s32 %s582, %s583
        %s585 = smul.addr %s584, 4
        %s586 = scalar_lea.vmem %s3, %s585
        %p587 = pneg %p146
        %p588 = pneg %p143
        %s589 = smul.u32 2, %s32
        %p590 = scmp.lt.s32.totalorder %s31, 1
        %s591 = scalar_select %p590, %s31, 1
        %p592 = scmp.lt.s32.totalorder %s589, 1
        %s593 = scalar_select %p592, %s589, 1
        %s594 = smul.addr %s591, 2
        %s595 = sadd.s32 %s593, %s594
        %s596 = smul.addr %s595, 4
        %s597 = scalar_lea.vmem %s4, %s596
        %p598 = pneg %p174
        %p599 = pneg %p171
        %p600 = scmp.lt.s32.totalorder %s31, 1
        %s601 = scalar_select %p600, %s31, 1
        %s602 = smul.addr %s601, 4
        %s603 = smul.addr %s602, 8
        %s604 = scalar_lea.vmem %s5, %s603
        %p605 = pneg %p200
        %p606 = pneg %p197
        %p607 = scmp.lt.s32.totalorder %s31, 1
        %s608 = scalar_select %p607, %s31, 1
        %s609 = smul.addr %s608, 4
        %s610 = smul.addr %s609, 8
        %s611 = scalar_lea.vmem %s6, %s610
        %p612 = pneg %p226
        %p613 = pneg %p223
        %p614 = scmp.lt.s32.totalorder %s31, 1
        %s615 = scalar_select %p614, %s31, 1
        %s616 = smul.addr %s615, 4
        %s617 = smul.addr %s616, 8
        %s618 = scalar_lea.vmem %s7, %s617
        %p619 = pneg %p252
        %p620 = pneg %p249
        %p621 = scmp.lt.s32.totalorder %s31, 1
        %s622 = scalar_select %p621, %s31, 1
        %s623 = smul.addr %s622, 4
        %s624 = smul.addr %s623, 8
        %s625 = scalar_lea.vmem %s8, %s624
        %p626 = pneg %p278
        %p627 = pneg %p275
        %p628 = scmp.lt.s32.totalorder %s31, 1
        %s629 = scalar_select %p628, %s31, 1
        %s630 = smul.addr %s629, 4
        %s631 = smul.addr %s630, 8
        %s632 = scalar_lea.vmem %s9, %s631
        %p633 = pneg %p304
        %p634 = pneg %p301
        %p635 = scmp.lt.s32.totalorder %s31, 1
        %s636 = scalar_select %p635, %s31, 1
        %s637 = smul.addr %s636, 4
        %s638 = smul.addr %s637, 8
        %s639 = scalar_lea.vmem %s10, %s638
        %p640 = pneg %p330
        %p641 = pneg %p327
        %p642 = pneg %p351
        %p643 = pneg %p348
        %p644 = pneg %p372
        %p645 = pneg %p369
        %p646 = pneg %p400
        %p647 = pneg %p397
        %s648 = sand.u32 %s387, 1
        %s649 = scalar_lea.sflag [#allocation3], %s648
        %s650 = sand.u32 %s387, 1
        %s651 = scalar_lea.vmem [#allocation2], %s650
        %s652 = smul.u32 2, %s32
        %p653 = scmp.lt.s32.totalorder %s31, 1
        %s654 = scalar_select %p653, %s31, 1
        %p655 = scmp.lt.s32.totalorder %s652, 1
        %s656 = scalar_select %p655, %s652, 1
        %s657 = smul.addr %s654, 2
        %s658 = sadd.s32 %s656, %s657
        %s659 = smul.addr %s658, 4
        %s660 = scalar_lea.vmem %s0, %s659
        %s661 = smul.u32 2, %s32
        %s662 = smul.u32 2, %s32
        %p663 = scmp.lt.s32.totalorder %s31, 1
        %s664 = scalar_select %p663, %s31, 1
        %p665 = scmp.lt.s32.totalorder %s662, 1
        %s666 = scalar_select %p665, %s662, 1
        %s667 = smul.addr %s664, 2
        %s668 = sadd.s32 %s666, %s667
        %s669 = smul.addr %s668, 4
        %s670 = scalar_lea.vmem %s1, %s669
        %s671 = smul.u32 2, %s32
        %s672 = smul.u32 2, %s32
        %p673 = scmp.lt.s32.totalorder %s31, 1
        %s674 = scalar_select %p673, %s31, 1
        %p675 = scmp.lt.s32.totalorder %s672, 1
        %s676 = scalar_select %p675, %s672, 1
        %s677 = smul.addr %s674, 2
        %s678 = sadd.s32 %s676, %s677
        %s679 = smul.addr %s678, 4
        %s680 = scalar_lea.vmem %s2, %s679
        %s681 = smul.u32 2, %s32
        %s682 = smul.u32 2, %s32
        %p683 = scmp.lt.s32.totalorder %s31, 1
        %s684 = scalar_select %p683, %s31, 1
        %p685 = scmp.lt.s32.totalorder %s682, 1
        %s686 = scalar_select %p685, %s682, 1
        %s687 = smul.addr %s684, 2
        %s688 = sadd.s32 %s686, %s687
        %s689 = smul.addr %s688, 4
        %s690 = scalar_lea.vmem %s3, %s689
        %s691 = smul.u32 2, %s32
        %s692 = smul.u32 2, %s32
        %p693 = scmp.lt.s32.totalorder %s31, 1
        %s694 = scalar_select %p693, %s31, 1
        %p695 = scmp.lt.s32.totalorder %s692, 1
        %s696 = scalar_select %p695, %s692, 1
        %s697 = smul.addr %s694, 2
        %s698 = sadd.s32 %s696, %s697
        %s699 = smul.addr %s698, 4
        %s700 = scalar_lea.vmem %s4, %s699
        %s701 = smul.u32 2, %s32
        %p702 = scmp.lt.s32.totalorder %s31, 1
        %s703 = scalar_select %p702, %s31, 1
        %s704 = smul.addr %s703, 4
        %s705 = smul.addr %s704, 8
        %s706 = scalar_lea.vmem %s5, %s705
        %p707 = scmp.lt.s32.totalorder %s31, 1
        %s708 = scalar_select %p707, %s31, 1
        %s709 = smul.addr %s708, 4
        %s710 = smul.addr %s709, 8
        %s711 = scalar_lea.vmem %s6, %s710
        %p712 = scmp.lt.s32.totalorder %s31, 1
        %s713 = scalar_select %p712, %s31, 1
        %s714 = smul.addr %s713, 4
        %s715 = smul.addr %s714, 8
        %s716 = scalar_lea.vmem %s7, %s715
        %p717 = scmp.lt.s32.totalorder %s31, 1
        %s718 = scalar_select %p717, %s31, 1
        %s719 = smul.addr %s718, 4
        %s720 = smul.addr %s719, 8
        %s721 = scalar_lea.vmem %s8, %s720
        %p722 = scmp.lt.s32.totalorder %s31, 1
        %s723 = scalar_select %p722, %s31, 1
        %s724 = smul.addr %s723, 4
        %s725 = smul.addr %s724, 8
        %s726 = scalar_lea.vmem %s9, %s725
        %p727 = scmp.lt.s32.totalorder %s31, 1
        %s728 = scalar_select %p727, %s31, 1
        %s729 = smul.addr %s728, 4
        %s730 = smul.addr %s729, 8
        %s731 = scalar_lea.vmem %s10, %s730
        %v732 = vld [vmem:[%s660] sm:$0x77]
        %v733 = vld [vmem:[%s670] sm:$0x77]
        %v734 = vld [vmem:[%s680] sm:$0x77]
        %v735 = vld [vmem:[%s690] sm:$0x77]
        %v736 = vld [vmem:[%s700] sm:$0x77]
        %v737 = vld [vmem:[%s706] sm:$0xff]
        %v738 = vld [vmem:[%s706 + $0x8] sm:$0xff]
        %v739 = vld [vmem:[%s706 + $0x10] sm:$0xff]
        %v740 = vld [vmem:[%s706 + $0x18] sm:$0xff]
        %v741 = vld [vmem:[%s711] sm:$0xff]
        %v742 = vld [vmem:[%s711 + $0x8] sm:$0xff]
        %v743 = vld [vmem:[%s711 + $0x10] sm:$0xff]
        %v744 = vld [vmem:[%s711 + $0x18] sm:$0xff]
        %v746 = vcombine.high %v734, %v734
        %vm747 = vcmask 23552
        %v749 = vsel %vm747, %v741, 0
        %v752 = vsel %vm747, %v742, 0
        %v755 = vsel %vm747, %v743, 0
        %v758 = vsel %vm747, %v744, 0
        %vm760 = vcmask 1042432
        %v761 = vsel %vm760, %v734, 0
        %v763 = vsel %vm760, %v746, 0
        %765 = vmatprep.subr.mxu0 %v763
        %766 = vmatpush1.msra.mxu0 %v761
        %767 = vmatprep.subr.mxu0 0.0
        %768 = vmatpush1.msra.mxu0 0.0
        %769 = vmatprep.subr.mxu0 0.0
        %770 = vmatpush1.msra.mxu0 0.0
        %771 = vmatprep.subr.mxu0 0.0
        %772 = vmatpush1.msra.mxu0 0.0
        %773 = vmatprep.subr.mxu0 0.0
        %774 = vmatpush1.msra.mxu0 0.0
        %775 = vmatprep.subr.mxu0 0.0
        %776 = vmatpush1.msra.mxu0 0.0
        %777 = vmatprep.subr.mxu0 0.0
        %778 = vmatpush1.msra.mxu0 0.0
        %779 = vmatprep.subr.mxu0 0.0
        %780 = vmatpush1.msra.mxu0 0.0
        %781 = vmatprep.subr.mxu0 0.0
        %782 = vmatpush1.msra.mxu0 0.0
        %783 = vmatprep.subr.mxu0 0.0
        %784 = vmatpush1.msra.mxu0 0.0
        %785 = vmatprep.subr.mxu0 0.0
        %786 = vmatpush1.msra.mxu0 0.0
        %787 = vmatprep.subr.mxu0 0.0
        %788 = vmatpush1.msra.mxu0 0.0
        %789 = vmatprep.subr.mxu0 0.0
        %790 = vmatpush1.msra.mxu0 0.0
        %791 = vmatprep.subr.mxu0 0.0
        %792 = vmatpush1.msra.mxu0 0.0
        %793 = vmatprep.subr.mxu0 0.0
        %794 = vmatpush1.msra.mxu0 0.0
        %795 = vmatprep.subr.mxu0 0.0
        %796 = vmatpush1.msra.mxu0 0.0
        %797 = vmatprep.subr.mxu0 0.0
        %798 = vmatpush1.msra.mxu0 0.0
        %799 = vmatprep.subr.mxu0 0.0
        %800 = vmatpush1.msra.mxu0 0.0
        %801 = vmatprep.subr.mxu0 0.0
        %802 = vmatpush1.msra.mxu0 0.0
        %803 = vmatprep.subr.mxu0 0.0
        %804 = vmatpush1.msra.mxu0 0.0
        %805 = vmatprep.subr.mxu0 0.0
        %806 = vmatpush1.msra.mxu0 0.0
        %807 = vmatprep.subr.mxu0 0.0
        %808 = vmatpush1.msra.mxu0 0.0
        %809 = vmatprep.subr.mxu0 0.0
        %810 = vmatpush1.msra.mxu0 0.0
        %811 = vmatprep.subr.mxu0 0.0
        %812 = vmatpush1.msra.mxu0 0.0
        %813 = vmatprep.subr.mxu0 0.0
        %814 = vmatpush1.msra.mxu0 0.0
        %815 = vmatprep.subr.mxu0 0.0
        %816 = vmatpush1.msra.mxu0 0.0
        %817 = vmatprep.subr.mxu0 0.0
        %818 = vmatpush1.msra.mxu0 0.0
        %819 = vmatprep.subr.mxu0 0.0
        %820 = vmatpush1.msra.mxu0 0.0
        %821 = vmatprep.subr.mxu0 0.0
        %822 = vmatpush1.msra.mxu0 0.0
        %823 = vmatprep.subr.mxu0 0.0
        %824 = vmatpush1.msra.mxu0 0.0
        %825 = vmatprep.subr.mxu0 0.0
        %826 = vmatpush1.msra.mxu0 0.0
        %827 = vmatprep.subr.mxu0 0.0
        %828 = vmatpush1.msra.mxu0 0.0
        %829 = vmatprep.mubr.f32.mxu0 0.0
        %830 = vmatmul.mubr.f32.gmra.mrb[0].mxu0 %v749
        %v831 = vpop.f32.mrb[0].mxu0
        %v832 = vadd.f32 0.0, %v831
        %v833 = vpop.f32.mrb[0].mxu0
        %v834 = vadd.f32 0.0, %v833
        %835 = vmatprep.mubr.f32.mxu0 0.0
        %836 = vmatmul.mubr.f32.gmra.mrb[0].mxu0 %v752
        %v837 = vpop.f32.mrb[0].mxu0
        %v838 = vadd.f32 0.0, %v837
        %v839 = vpop.f32.mrb[0].mxu0
        %v840 = vadd.f32 0.0, %v839
        %841 = vmatprep.mubr.f32.mxu0 0.0
        %842 = vmatmul.mubr.f32.gmra.mrb[0].mxu0 %v755
        %v843 = vpop.f32.mrb[0].mxu0
        %v844 = vadd.f32 0.0, %v843
        %v845 = vpop.f32.mrb[0].mxu0
        %v846 = vadd.f32 0.0, %v845
        %847 = vmatprep.mubr.f32.mxu0 0.0
        %848 = vmatmul.mubr.f32.gmra.mrb[0].mxu0 %v758
        %v849 = vpop.f32.mrb[0].mxu0
        %v850 = vadd.f32 0.0, %v849
        %v851 = vpop.f32.mrb[0].mxu0
        %v852 = vadd.f32 0.0, %v851
        %853 = vdwg.mxu0
        %v855 = vcombine.high %v733, %v733
        %v857 = vsel %vm747, %v737, 0
        %v860 = vsel %vm747, %v738, 0
        %v863 = vsel %vm747, %v739, 0
        %v866 = vsel %vm747, %v740, 0
        %v868 = vsel %vm760, %v733, 0
        %v870 = vsel %vm760, %v855, 0
        %872 = vmatprep.subr.mxu0 %v870
        %873 = vmatpush1.msra.mxu0 %v868
        %874 = vmatprep.subr.mxu0 0.0
        %875 = vmatpush1.msra.mxu0 0.0
        %876 = vmatprep.subr.mxu0 0.0
        %877 = vmatpush1.msra.mxu0 0.0
        %878 = vmatprep.subr.mxu0 0.0
        %879 = vmatpush1.msra.mxu0 0.0
        %880 = vmatprep.subr.mxu0 0.0
        %881 = vmatpush1.msra.mxu0 0.0
        %882 = vmatprep.subr.mxu0 0.0
        %883 = vmatpush1.msra.mxu0 0.0
        %884 = vmatprep.subr.mxu0 0.0
        %885 = vmatpush1.msra.mxu0 0.0
        %886 = vmatprep.subr.mxu0 0.0
        %887 = vmatpush1.msra.mxu0 0.0
        %888 = vmatprep.subr.mxu0 0.0
        %889 = vmatpush1.msra.mxu0 0.0
        %890 = vmatprep.subr.mxu0 0.0
        %891 = vmatpush1.msra.mxu0 0.0
        %892 = vmatprep.subr.mxu0 0.0
        %893 = vmatpush1.msra.mxu0 0.0
        %894 = vmatprep.subr.mxu0 0.0
        %895 = vmatpush1.msra.mxu0 0.0
        %896 = vmatprep.subr.mxu0 0.0
        %897 = vmatpush1.msra.mxu0 0.0
        %898 = vmatprep.subr.mxu0 0.0
        %899 = vmatpush1.msra.mxu0 0.0
        %900 = vmatprep.subr.mxu0 0.0
        %901 = vmatpush1.msra.mxu0 0.0
        %902 = vmatprep.subr.mxu0 0.0
        %903 = vmatpush1.msra.mxu0 0.0
        %904 = vmatprep.subr.mxu0 0.0
        %905 = vmatpush1.msra.mxu0 0.0
        %906 = vmatprep.subr.mxu0 0.0
        %907 = vmatpush1.msra.mxu0 0.0
        %908 = vmatprep.subr.mxu0 0.0
        %909 = vmatpush1.msra.mxu0 0.0
        %910 = vmatprep.subr.mxu0 0.0
        %911 = vmatpush1.msra.mxu0 0.0
        %912 = vmatprep.subr.mxu0 0.0
        %913 = vmatpush1.msra.mxu0 0.0
        %914 = vmatprep.subr.mxu0 0.0
        %915 = vmatpush1.msra.mxu0 0.0
        %916 = vmatprep.subr.mxu0 0.0
        %917 = vmatpush1.msra.mxu0 0.0
        %918 = vmatprep.subr.mxu0 0.0
        %919 = vmatpush1.msra.mxu0 0.0
        %920 = vmatprep.subr.mxu0 0.0
        %921 = vmatpush1.msra.mxu0 0.0
        %922 = vmatprep.subr.mxu0 0.0
        %923 = vmatpush1.msra.mxu0 0.0
        %924 = vmatprep.subr.mxu0 0.0
        %925 = vmatpush1.msra.mxu0 0.0
        %926 = vmatprep.subr.mxu0 0.0
        %927 = vmatpush1.msra.mxu0 0.0
        %928 = vmatprep.subr.mxu0 0.0
        %929 = vmatpush1.msra.mxu0 0.0
        %930 = vmatprep.subr.mxu0 0.0
        %931 = vmatpush1.msra.mxu0 0.0
        %932 = vmatprep.subr.mxu0 0.0
        %933 = vmatpush1.msra.mxu0 0.0
        %934 = vmatprep.subr.mxu0 0.0
        %935 = vmatpush1.msra.mxu0 0.0
        %936 = vmatprep.mubr.f32.mxu0 0.0
        %937 = vmatmul.mubr.f32.gmra.mrb[0].mxu0 %v857
        %v938 = vpop.f32.mrb[0].mxu0
        %v939 = vadd.f32 %v832, %v938
        %v940 = vpop.f32.mrb[0].mxu0
        %v941 = vadd.f32 %v834, %v940
        %942 = vmatprep.mubr.f32.mxu0 0.0
        %943 = vmatmul.mubr.f32.gmra.mrb[0].mxu0 %v860
        %v944 = vpop.f32.mrb[0].mxu0
        %v945 = vadd.f32 %v838, %v944
        %v946 = vpop.f32.mrb[0].mxu0
        %v947 = vadd.f32 %v840, %v946
        %948 = vmatprep.mubr.f32.mxu0 0.0
        %949 = vmatmul.mubr.f32.gmra.mrb[0].mxu0 %v863
        %v950 = vpop.f32.mrb[0].mxu0
        %v951 = vadd.f32 %v844, %v950
        %v952 = vpop.f32.mrb[0].mxu0
        %v953 = vadd.f32 %v846, %v952
        %954 = vmatprep.mubr.f32.mxu0 0.0
        %955 = vmatmul.mubr.f32.gmra.mrb[0].mxu0 %v866
        %v956 = vpop.f32.mrb[0].mxu0
        %v957 = vadd.f32 %v850, %v956
        %v958 = vpop.f32.mrb[0].mxu0
        %v959 = vadd.f32 %v852, %v958
        %960 = vdwg.mxu0
        %v961 = vld [vmem:[%s716] sm:$0xff]
        %v962 = vld [vmem:[%s716 + $0x8] sm:$0xff]
        %v963 = vld [vmem:[%s716 + $0x10] sm:$0xff]
        %v964 = vld [vmem:[%s716 + $0x18] sm:$0xff]
        %v966 = vcombine.high %v735, %v735
        %v968 = vsel %vm747, %v961, 0
        %v971 = vsel %vm747, %v962, 0
        %v974 = vsel %vm747, %v963, 0
        %v977 = vsel %vm747, %v964, 0
        %v979 = vsel %vm760, %v735, 0
        %v981 = vsel %vm760, %v966, 0
        %983 = vmatprep.subr.mxu0 %v981
        %984 = vmatpush1.msra.mxu0 %v979
        %985 = vmatprep.subr.mxu0 0.0
        %986 = vmatpush1.msra.mxu0 0.0
        %987 = vmatprep.subr.mxu0 0.0
        %988 = vmatpush1.msra.mxu0 0.0
        %989 = vmatprep.subr.mxu0 0.0
        %990 = vmatpush1.msra.mxu0 0.0
        %991 = vmatprep.subr.mxu0 0.0
        %992 = vmatpush1.msra.mxu0 0.0
        %993 = vmatprep.subr.mxu0 0.0
        %994 = vmatpush1.msra.mxu0 0.0
        %995 = vmatprep.subr.mxu0 0.0
        %996 = vmatpush1.msra.mxu0 0.0
        %997 = vmatprep.subr.mxu0 0.0
        %998 = vmatpush1.msra.mxu0 0.0
        %999 = vmatprep.subr.mxu0 0.0
        %1000 = vmatpush1.msra.mxu0 0.0
        %1001 = vmatprep.subr.mxu0 0.0
        %1002 = vmatpush1.msra.mxu0 0.0
        %1003 = vmatprep.subr.mxu0 0.0
        %1004 = vmatpush1.msra.mxu0 0.0
        %1005 = vmatprep.subr.mxu0 0.0
        %1006 = vmatpush1.msra.mxu0 0.0
        %1007 = vmatprep.subr.mxu0 0.0
        %1008 = vmatpush1.msra.mxu0 0.0
        %1009 = vmatprep.subr.mxu0 0.0
        %1010 = vmatpush1.msra.mxu0 0.0
        %1011 = vmatprep.subr.mxu0 0.0
        %1012 = vmatpush1.msra.mxu0 0.0
        %1013 = vmatprep.subr.mxu0 0.0
        %1014 = vmatpush1.msra.mxu0 0.0
        %1015 = vmatprep.subr.mxu0 0.0
        %1016 = vmatpush1.msra.mxu0 0.0
        %1017 = vmatprep.subr.mxu0 0.0
        %1018 = vmatpush1.msra.mxu0 0.0
        %1019 = vmatprep.subr.mxu0 0.0
        %1020 = vmatpush1.msra.mxu0 0.0
        %1021 = vmatprep.subr.mxu0 0.0
        %1022 = vmatpush1.msra.mxu0 0.0
        %1023 = vmatprep.subr.mxu0 0.0
        %1024 = vmatpush1.msra.mxu0 0.0
        %1025 = vmatprep.subr.mxu0 0.0
        %1026 = vmatpush1.msra.mxu0 0.0
        %1027 = vmatprep.subr.mxu0 0.0
        %1028 = vmatpush1.msra.mxu0 0.0
        %1029 = vmatprep.subr.mxu0 0.0
        %1030 = vmatpush1.msra.mxu0 0.0
        %1031 = vmatprep.subr.mxu0 0.0
        %1032 = vmatpush1.msra.mxu0 0.0
        %1033 = vmatprep.subr.mxu0 0.0
        %1034 = vmatpush1.msra.mxu0 0.0
        %1035 = vmatprep.subr.mxu0 0.0
        %1036 = vmatpush1.msra.mxu0 0.0
        %1037 = vmatprep.subr.mxu0 0.0
        %1038 = vmatpush1.msra.mxu0 0.0
        %1039 = vmatprep.subr.mxu0 0.0
        %1040 = vmatpush1.msra.mxu0 0.0
        %1041 = vmatprep.subr.mxu0 0.0
        %1042 = vmatpush1.msra.mxu0 0.0
        %1043 = vmatprep.subr.mxu0 0.0
        %1044 = vmatpush1.msra.mxu0 0.0
        %1045 = vmatprep.subr.mxu0 0.0
        %1046 = vmatpush1.msra.mxu0 0.0
        %1047 = vmatprep.mubr.f32.mxu0 0.0
        %1048 = vmatmul.mubr.f32.gmra.mrb[0].mxu0 %v968
        %v1049 = vpop.f32.mrb[0].mxu0
        %v1050 = vadd.f32 0.0, %v1049
        %v1051 = vpop.f32.mrb[0].mxu0
        %v1052 = vadd.f32 0.0, %v1051
        %1053 = vmatprep.mubr.f32.mxu0 0.0
        %1054 = vmatmul.mubr.f32.gmra.mrb[0].mxu0 %v971
        %v1055 = vpop.f32.mrb[0].mxu0
        %v1056 = vadd.f32 0.0, %v1055
        %v1057 = vpop.f32.mrb[0].mxu0
        %v1058 = vadd.f32 0.0, %v1057
        %1059 = vmatprep.mubr.f32.mxu0 0.0
        %1060 = vmatmul.mubr.f32.gmra.mrb[0].mxu0 %v974
        %v1061 = vpop.f32.mrb[0].mxu0
        %v1062 = vadd.f32 0.0, %v1061
        %v1063 = vpop.f32.mrb[0].mxu0
        %v1064 = vadd.f32 0.0, %v1063
        %1065 = vmatprep.mubr.f32.mxu0 0.0
        %1066 = vmatmul.mubr.f32.gmra.mrb[0].mxu0 %v977
        %v1067 = vpop.f32.mrb[0].mxu0
        %v1068 = vadd.f32 0.0, %v1067
        %v1069 = vpop.f32.mrb[0].mxu0
        %v1070 = vadd.f32 0.0, %v1069
        %1071 = vdwg.mxu0
        %v1072 = vadd.f32 %v939, %v1050
        %v1073 = vadd.f32 %v941, %v1052
        %v1074 = vadd.f32 %v945, %v1056
        %v1075 = vadd.f32 %v947, %v1058
        %v1076 = vadd.f32 %v951, %v1062
        %v1077 = vadd.f32 %v953, %v1064
        %v1078 = vadd.f32 %v957, %v1068
        %v1079 = vadd.f32 %v959, %v1070
        %v1080 = vld [vmem:[%s721] sm:$0xff]
        %v1081 = vld [vmem:[%s721 + $0x8] sm:$0xff]
        %v1082 = vld [vmem:[%s721 + $0x10] sm:$0xff]
        %v1083 = vld [vmem:[%s721 + $0x18] sm:$0xff]
        %v1085 = vcombine.high %v732, %v732
        %v1087 = vsel %vm747, %v1080, 0
        %v1090 = vsel %vm747, %v1081, 0
        %v1093 = vsel %vm747, %v1082, 0
        %v1096 = vsel %vm747, %v1083, 0
        %v1098 = vsel %vm760, %v732, 0
        %v1100 = vsel %vm760, %v1085, 0
        %1102 = vmatprep.subr.mxu0 %v1100
        %1103 = vmatpush1.msra.mxu0 %v1098
        %1104 = vmatprep.subr.mxu0 0.0
        %1105 = vmatpush1.msra.mxu0 0.0
        %1106 = vmatprep.subr.mxu0 0.0
        %1107 = vmatpush1.msra.mxu0 0.0
        %1108 = vmatprep.subr.mxu0 0.0
        %1109 = vmatpush1.msra.mxu0 0.0
        %1110 = vmatprep.subr.mxu0 0.0
        %1111 = vmatpush1.msra.mxu0 0.0
        %1112 = vmatprep.subr.mxu0 0.0
        %1113 = vmatpush1.msra.mxu0 0.0
        %1114 = vmatprep.subr.mxu0 0.0
        %1115 = vmatpush1.msra.mxu0 0.0
        %1116 = vmatprep.subr.mxu0 0.0
        %1117 = vmatpush1.msra.mxu0 0.0
        %1118 = vmatprep.subr.mxu0 0.0
        %1119 = vmatpush1.msra.mxu0 0.0
        %1120 = vmatprep.subr.mxu0 0.0
        %1121 = vmatpush1.msra.mxu0 0.0
        %1122 = vmatprep.subr.mxu0 0.0
        %1123 = vmatpush1.msra.mxu0 0.0
        %1124 = vmatprep.subr.mxu0 0.0
        %1125 = vmatpush1.msra.mxu0 0.0
        %1126 = vmatprep.subr.mxu0 0.0
        %1127 = vmatpush1.msra.mxu0 0.0
        %1128 = vmatprep.subr.mxu0 0.0
        %1129 = vmatpush1.msra.mxu0 0.0
        %1130 = vmatprep.subr.mxu0 0.0
        %1131 = vmatpush1.msra.mxu0 0.0
        %1132 = vmatprep.subr.mxu0 0.0
        %1133 = vmatpush1.msra.mxu0 0.0
        %1134 = vmatprep.subr.mxu0 0.0
        %1135 = vmatpush1.msra.mxu0 0.0
        %1136 = vmatprep.subr.mxu0 0.0
        %1137 = vmatpush1.msra.mxu0 0.0
        %1138 = vmatprep.subr.mxu0 0.0
        %1139 = vmatpush1.msra.mxu0 0.0
        %1140 = vmatprep.subr.mxu0 0.0
        %1141 = vmatpush1.msra.mxu0 0.0
        %1142 = vmatprep.subr.mxu0 0.0
        %1143 = vmatpush1.msra.mxu0 0.0
        %1144 = vmatprep.subr.mxu0 0.0
        %1145 = vmatpush1.msra.mxu0 0.0
        %1146 = vmatprep.subr.mxu0 0.0
        %1147 = vmatpush1.msra.mxu0 0.0
        %1148 = vmatprep.subr.mxu0 0.0
        %1149 = vmatpush1.msra.mxu0 0.0
        %1150 = vmatprep.subr.mxu0 0.0
        %1151 = vmatpush1.msra.mxu0 0.0
        %1152 = vmatprep.subr.mxu0 0.0
        %1153 = vmatpush1.msra.mxu0 0.0
        %1154 = vmatprep.subr.mxu0 0.0
        %1155 = vmatpush1.msra.mxu0 0.0
        %1156 = vmatprep.subr.mxu0 0.0
        %1157 = vmatpush1.msra.mxu0 0.0
        %1158 = vmatprep.subr.mxu0 0.0
        %1159 = vmatpush1.msra.mxu0 0.0
        %1160 = vmatprep.subr.mxu0 0.0
        %1161 = vmatpush1.msra.mxu0 0.0
        %1162 = vmatprep.subr.mxu0 0.0
        %1163 = vmatpush1.msra.mxu0 0.0
        %1164 = vmatprep.subr.mxu0 0.0
        %1165 = vmatpush1.msra.mxu0 0.0
        %1166 = vmatprep.mubr.f32.mxu0 0.0
        %1167 = vmatmul.mubr.f32.gmra.mrb[0].mxu0 %v1087
        %v1168 = vpop.f32.mrb[0].mxu0
        %v1169 = vadd.f32 0.0, %v1168
        %v1170 = vpop.f32.mrb[0].mxu0
        %v1171 = vadd.f32 0.0, %v1170
        %1172 = vmatprep.mubr.f32.mxu0 0.0
        %1173 = vmatmul.mubr.f32.gmra.mrb[0].mxu0 %v1090
        %v1174 = vpop.f32.mrb[0].mxu0
        %v1175 = vadd.f32 0.0, %v1174
        %v1176 = vpop.f32.mrb[0].mxu0
        %v1177 = vadd.f32 0.0, %v1176
        %1178 = vmatprep.mubr.f32.mxu0 0.0
        %1179 = vmatmul.mubr.f32.gmra.mrb[0].mxu0 %v1093
        %v1180 = vpop.f32.mrb[0].mxu0
        %v1181 = vadd.f32 0.0, %v1180
        %v1182 = vpop.f32.mrb[0].mxu0
        %v1183 = vadd.f32 0.0, %v1182
        %1184 = vmatprep.mubr.f32.mxu0 0.0
        %1185 = vmatmul.mubr.f32.gmra.mrb[0].mxu0 %v1096
        %v1186 = vpop.f32.mrb[0].mxu0
        %v1187 = vadd.f32 0.0, %v1186
        %v1188 = vpop.f32.mrb[0].mxu0
        %v1189 = vadd.f32 0.0, %v1188
        %1190 = vdwg.mxu0
        %v1191 = vadd.f32 %v1072, %v1169
        %v1192 = vadd.f32 %v1073, %v1171
        %v1193 = vadd.f32 %v1074, %v1175
        %v1194 = vadd.f32 %v1075, %v1177
        %v1195 = vadd.f32 %v1076, %v1181
        %v1196 = vadd.f32 %v1077, %v1183
        %v1197 = vadd.f32 %v1078, %v1187
        %v1198 = vadd.f32 %v1079, %v1189
        %v1199 = vld [vmem:[%s726] sm:$0xff]
        %v1200 = vld [vmem:[%s726 + $0x8] sm:$0xff]
        %v1201 = vld [vmem:[%s726 + $0x10] sm:$0xff]
        %v1202 = vld [vmem:[%s726 + $0x18] sm:$0xff]
        %v1204 = vcombine.high %v736, %v736
        %v1206 = vsel %vm747, %v1199, 0
        %v1209 = vsel %vm747, %v1200, 0
        %v1212 = vsel %vm747, %v1201, 0
        %v1215 = vsel %vm747, %v1202, 0
        %v1217 = vsel %vm760, %v736, 0
        %v1219 = vsel %vm760, %v1204, 0
        %1221 = vmatprep.subr.mxu0 %v1219
        %1222 = vmatpush1.msra.mxu0 %v1217
        %1223 = vmatprep.subr.mxu0 0.0
        %1224 = vmatpush1.msra.mxu0 0.0
        %1225 = vmatprep.subr.mxu0 0.0
        %1226 = vmatpush1.msra.mxu0 0.0
        %1227 = vmatprep.subr.mxu0 0.0
        %1228 = vmatpush1.msra.mxu0 0.0
        %1229 = vmatprep.subr.mxu0 0.0
        %1230 = vmatpush1.msra.mxu0 0.0
        %1231 = vmatprep.subr.mxu0 0.0
        %1232 = vmatpush1.msra.mxu0 0.0
        %1233 = vmatprep.subr.mxu0 0.0
        %1234 = vmatpush1.msra.mxu0 0.0
        %1235 = vmatprep.subr.mxu0 0.0
        %1236 = vmatpush1.msra.mxu0 0.0
        %1237 = vmatprep.subr.mxu0 0.0
        %1238 = vmatpush1.msra.mxu0 0.0
        %1239 = vmatprep.subr.mxu0 0.0
        %1240 = vmatpush1.msra.mxu0 0.0
        %1241 = vmatprep.subr.mxu0 0.0
        %1242 = vmatpush1.msra.mxu0 0.0
        %1243 = vmatprep.subr.mxu0 0.0
        %1244 = vmatpush1.msra.mxu0 0.0
        %1245 = vmatprep.subr.mxu0 0.0
        %1246 = vmatpush1.msra.mxu0 0.0
        %1247 = vmatprep.subr.mxu0 0.0
        %1248 = vmatpush1.msra.mxu0 0.0
        %1249 = vmatprep.subr.mxu0 0.0
        %1250 = vmatpush1.msra.mxu0 0.0
        %1251 = vmatprep.subr.mxu0 0.0
        %1252 = vmatpush1.msra.mxu0 0.0
        %1253 = vmatprep.subr.mxu0 0.0
        %1254 = vmatpush1.msra.mxu0 0.0
        %1255 = vmatprep.subr.mxu0 0.0
        %1256 = vmatpush1.msra.mxu0 0.0
        %1257 = vmatprep.subr.mxu0 0.0
        %1258 = vmatpush1.msra.mxu0 0.0
        %1259 = vmatprep.subr.mxu0 0.0
        %1260 = vmatpush1.msra.mxu0 0.0
        %1261 = vmatprep.subr.mxu0 0.0
        %1262 = vmatpush1.msra.mxu0 0.0
        %1263 = vmatprep.subr.mxu0 0.0
        %1264 = vmatpush1.msra.mxu0 0.0
        %1265 = vmatprep.subr.mxu0 0.0
        %1266 = vmatpush1.msra.mxu0 0.0
        %1267 = vmatprep.subr.mxu0 0.0
        %1268 = vmatpush1.msra.mxu0 0.0
        %1269 = vmatprep.subr.mxu0 0.0
        %1270 = vmatpush1.msra.mxu0 0.0
        %1271 = vmatprep.subr.mxu0 0.0
        %1272 = vmatpush1.msra.mxu0 0.0
        %1273 = vmatprep.subr.mxu0 0.0
        %1274 = vmatpush1.msra.mxu0 0.0
        %1275 = vmatprep.subr.mxu0 0.0
        %1276 = vmatpush1.msra.mxu0 0.0
        %1277 = vmatprep.subr.mxu0 0.0
        %1278 = vmatpush1.msra.mxu0 0.0
        %1279 = vmatprep.subr.mxu0 0.0
        %1280 = vmatpush1.msra.mxu0 0.0
        %1281 = vmatprep.subr.mxu0 0.0
        %1282 = vmatpush1.msra.mxu0 0.0
        %1283 = vmatprep.subr.mxu0 0.0
        %1284 = vmatpush1.msra.mxu0 0.0
        %1285 = vmatprep.mubr.f32.mxu0 0.0
        %1286 = vmatmul.mubr.f32.gmra.mrb[0].mxu0 %v1206
        %v1287 = vpop.f32.mrb[0].mxu0
        %v1288 = vadd.f32 0.0, %v1287
        %v1289 = vpop.f32.mrb[0].mxu0
        %v1290 = vadd.f32 0.0, %v1289
        %1291 = vmatprep.mubr.f32.mxu0 0.0
        %1292 = vmatmul.mubr.f32.gmra.mrb[0].mxu0 %v1209
        %v1293 = vpop.f32.mrb[0].mxu0
        %v1294 = vadd.f32 0.0, %v1293
        %v1295 = vpop.f32.mrb[0].mxu0
        %v1296 = vadd.f32 0.0, %v1295
        %1297 = vmatprep.mubr.f32.mxu0 0.0
        %1298 = vmatmul.mubr.f32.gmra.mrb[0].mxu0 %v1212
        %v1299 = vpop.f32.mrb[0].mxu0
        %v1300 = vadd.f32 0.0, %v1299
        %v1301 = vpop.f32.mrb[0].mxu0
        %v1302 = vadd.f32 0.0, %v1301
        %1303 = vmatprep.mubr.f32.mxu0 0.0
        %1304 = vmatmul.mubr.f32.gmra.mrb[0].mxu0 %v1215
        %v1305 = vpop.f32.mrb[0].mxu0
        %v1306 = vadd.f32 0.0, %v1305
        %v1307 = vpop.f32.mrb[0].mxu0
        %v1308 = vadd.f32 0.0, %v1307
        %1309 = vdwg.mxu0
        %v1310 = vadd.f32 %v1191, %v1288
        %v1311 = vadd.f32 %v1192, %v1290
        %v1312 = vadd.f32 %v1193, %v1294
        %v1313 = vadd.f32 %v1194, %v1296
        %v1314 = vadd.f32 %v1195, %v1300
        %v1315 = vadd.f32 %v1196, %v1302
        %v1316 = vadd.f32 %v1197, %v1306
        %v1317 = vadd.f32 %v1198, %v1308
        %v1318 = vld [vmem:[%s731] sm:$0xff]
        %v1319 = vld [vmem:[%s731 + $0x8] sm:$0xff]
        %v1320 = vld [vmem:[%s731 + $0x10] sm:$0xff]
        %v1321 = vld [vmem:[%s731 + $0x18] sm:$0xff]
        %1323 = vset.pattern.permute.xlu0 0
        %1324 = vperm.xlu0 %1323, %v1318
        %v1325 = vpop.permute.xlu0 %1324
        %1328 = vset.pattern.permute.xlu0 0
        %1329 = vperm.xlu0 %1328, %v1319
        %v1330 = vpop.permute.xlu0 %1329
        %1333 = vset.pattern.permute.xlu0 0
        %1334 = vperm.xlu0 %1333, %v1320
        %v1335 = vpop.permute.xlu0 %1334
        %1338 = vset.pattern.permute.xlu0 0
        %1339 = vperm.xlu0 %1338, %v1321
        %v1340 = vpop.permute.xlu0 %1339
        %v1342 = vadd.f32 %v1310, %v1325
        %v1343 = vadd.f32 %v1311, %v1325
        %v1344 = vadd.f32 %v1312, %v1330
        %v1345 = vadd.f32 %v1313, %v1330
        %v1346 = vadd.f32 %v1314, %v1335
        %v1347 = vadd.f32 %v1315, %v1335
        %v1348 = vadd.f32 %v1316, %v1340
        %v1349 = vadd.f32 %v1317, %v1340
        %v1350 = vmax.f32 %v1342, 0.0
        %v1351 = vmax.f32 %v1343, 0.0
        %v1352 = vmax.f32 %v1344, 0.0
        %v1353 = vmax.f32 %v1345, 0.0
        %v1354 = vmax.f32 %v1346, 0.0
        %v1355 = vmax.f32 %v1347, 0.0
        %v1356 = vmax.f32 %v1348, 0.0
        %v1357 = vmax.f32 %v1349, 0.0
        %v1358 = vld [vmem:[%s11] sm:$0x7]
        %v1359 = vld [vmem:[%s12] sm:$0x7]
        %1361 = vset.pattern.permute.xlu0 0
        %1362 = vperm.xlu0 %1361, %v1359
        %v1363 = vpop.permute.xlu0 %1362
        %vm1365 = vcmask 261120
        %v1367 = vsel %vm1365, %v1358, 0
        %1369 = vmatprep.subr.mxu0 %v1351
        %1370 = vmatpush1.msra.mxu0 %v1350
        %1371 = vmatprep.subr.mxu0 %v1353
        %1372 = vmatpush1.msra.mxu0 %v1352
        %1373 = vmatprep.subr.mxu0 %v1355
        %1374 = vmatpush1.msra.mxu0 %v1354
        %1375 = vmatprep.subr.mxu0 %v1357
        %1376 = vmatpush1.msra.mxu0 %v1356
        %1377 = vmatprep.subr.mxu0 0.0
        %1378 = vmatpush1.msra.mxu0 0.0
        %1379 = vmatprep.subr.mxu0 0.0
        %1380 = vmatpush1.msra.mxu0 0.0
        %1381 = vmatprep.subr.mxu0 0.0
        %1382 = vmatpush1.msra.mxu0 0.0
        %1383 = vmatprep.subr.mxu0 0.0
        %1384 = vmatpush1.msra.mxu0 0.0
        %1385 = vmatprep.subr.mxu0 0.0
        %1386 = vmatpush1.msra.mxu0 0.0
        %1387 = vmatprep.subr.mxu0 0.0
        %1388 = vmatpush1.msra.mxu0 0.0
        %1389 = vmatprep.subr.mxu0 0.0
        %1390 = vmatpush1.msra.mxu0 0.0
        %1391 = vmatprep.subr.mxu0 0.0
        %1392 = vmatpush1.msra.mxu0 0.0
        %1393 = vmatprep.subr.mxu0 0.0
        %1394 = vmatpush1.msra.mxu0 0.0
        %1395 = vmatprep.subr.mxu0 0.0
        %1396 = vmatpush1.msra.mxu0 0.0
        %1397 = vmatprep.subr.mxu0 0.0
        %1398 = vmatpush1.msra.mxu0 0.0
        %1399 = vmatprep.subr.mxu0 0.0
        %1400 = vmatpush1.msra.mxu0 0.0
        %1401 = vmatprep.subr.mxu0 0.0
        %1402 = vmatpush1.msra.mxu0 0.0
        %1403 = vmatprep.subr.mxu0 0.0
        %1404 = vmatpush1.msra.mxu0 0.0
        %1405 = vmatprep.subr.mxu0 0.0
        %1406 = vmatpush1.msra.mxu0 0.0
        %1407 = vmatprep.subr.mxu0 0.0
        %1408 = vmatpush1.msra.mxu0 0.0
        %1409 = vmatprep.subr.mxu0 0.0
        %1410 = vmatpush1.msra.mxu0 0.0
        %1411 = vmatprep.subr.mxu0 0.0
        %1412 = vmatpush1.msra.mxu0 0.0
        %1413 = vmatprep.subr.mxu0 0.0
        %1414 = vmatpush1.msra.mxu0 0.0
        %1415 = vmatprep.subr.mxu0 0.0
        %1416 = vmatpush1.msra.mxu0 0.0
        %1417 = vmatprep.subr.mxu0 0.0
        %1418 = vmatpush1.msra.mxu0 0.0
        %1419 = vmatprep.subr.mxu0 0.0
        %1420 = vmatpush1.msra.mxu0 0.0
        %1421 = vmatprep.subr.mxu0 0.0
        %1422 = vmatpush1.msra.mxu0 0.0
        %1423 = vmatprep.subr.mxu0 0.0
        %1424 = vmatpush1.msra.mxu0 0.0
        %1425 = vmatprep.subr.mxu0 0.0
        %1426 = vmatpush1.msra.mxu0 0.0
        %1427 = vmatprep.subr.mxu0 0.0
        %1428 = vmatpush1.msra.mxu0 0.0
        %1429 = vmatprep.subr.mxu0 0.0
        %1430 = vmatpush1.msra.mxu0 0.0
        %1431 = vmatprep.subr.mxu0 0.0
        %1432 = vmatpush1.msra.mxu0 0.0
        %1433 = vmatprep.mubr.f32.mxu0 0.0
        %1434 = vmatmul.mubr.f32.gmra.mrb[0].mxu0 %v1367
        %v1435 = vpop.f32.mrb[0].mxu0
        %v1436 = vadd.f32 %v1363, %v1435
        %v1437 = vpop.f32.mrb[0].mxu0
        %v1438 = vadd.f32 %v1363, %v1437
        %1439 = vdwg.mxu0
        %v1442 = vcombine.low %v1436, %v1438
        %v1444 = vsub.f32 %v736, %v1442
        %v1445 = vand.u32 2147483647, %v1444
        %v1447 = vcombine.high %v1445, %v1445
        %v1449 = vsel %vm760, %v1445, 0.0
        %v1450 = vsel %vm760, %v1447, 0.0
        %v1451 = vadd.f32 %v1449, %v1450
        %1452 = vadd.xlane.f32.xlu0 %v1451
        %v1453 = vpop.xlane.xlu0 %1452
        %v1454 = vrot.slane %v1453, 4
        %v1455 = vadd.f32 %v1453, %v1454
        %v1456 = vrot.slane %v1455, 2
        %v1457 = vadd.f32 %v1455, %v1456
        %v1458 = vrot.slane %v1457, 1
        %v1459 = vadd.f32 %v1457, %v1458
        %s1460 = vtos %v1459
        %v1461 = vstv %s1460
        %1462 = vst [vmem:[%s651] sm:$0x1] %v1461
        %s1463 = sand.u32 %s387, 1
        %s1464 = scalar_lea.sflag [#allocation3], %s1463
        %s1465 = sand.u32 %s387, 1
        %s1466 = scalar_lea.vmem [#allocation2], %s1465
        // Predicated region
        $region73: #{tpu_custom_call.1} parent=71 // pred_check
          %p1467 = pneg %p397
        $region74: #{tpu_custom_call.1} parent=71 // pred_check_branch
          %1469 = sbr.rel (%p1467) target = $region76
        $region75: #{tpu_custom_call.1} parent=71 // pred_region
          %s1471 = ssub.s32 16, 16
          %1472 = vsyncadd %s1464, %s1471
          %s1473 = sadd.s32 %s32, %s31
          %s1474 = smul.addr %s1473, 16
          %s1475 = scalar_lea.hbm %s13, %s1474
          %s1477 = sshll.u32 %s1466, 4
          %s1478 = int_to_ptr.vmem [resolvable:$true] %s1477
          %1480 = dma.vmem_to_hbm [thread:$0]  %s1478, 16, %s1475, %s1464
        $region76: #{tpu_custom_call.1} parent=71 // pred_fallthru
          _
      $region72: #{tpu_custom_call.1} parent=5 // pred_fallthru
        _
      %p1481 = scmp.le.s32.totalorder 2, %s22
      // Predicated region
      $region77: #{tpu_custom_call.1} parent=5 // pred_check
        %p1482 = pneg %p1481
      $region78: #{tpu_custom_call.1} parent=5 // pred_check_branch
        %1484 = sbr.rel (%p1482) target = $region80
      $region79: #{tpu_custom_call.1} parent=5 // pred_region
        %s1485 = ssub.s32 %s22, 2
        // Predicated region
        $region81: #{tpu_custom_call.1} parent=79 // pred_check
          %p1486 = pneg %p403
        $region82: #{tpu_custom_call.1} parent=79 // pred_check_branch
          %1488 = sbr.rel (%p1486) target = $region84
        $region83: #{tpu_custom_call.1} parent=79 // pred_region
          %s1489 = sand.u32 %s388, 1
          %s1490 = scalar_lea.sflag [#allocation3], %s1489
          %s1491 = sand.u32 %s388, 1
          %s1492 = scalar_lea.vmem [#allocation2], %s1491
          %1493 = dma.done %s1490, 16
        $region84: #{tpu_custom_call.1} parent=79 // pred_fallthru
          _
      $region80: #{tpu_custom_call.1} parent=5 // pred_fallthru
        _
    $region6: #{tpu_custom_call.1} parent=1 // loop_footer
      %s26 = sadd.s32 1, %s22
    $region7: #{tpu_custom_call.1} parent=1 // loop_footer_branch
      %21 = sbr.rel target = $region3
    $region8: #{tpu_custom_call.1} parent=1 // loop_exit
      _
    %1494 = vsyncpa [#allocation3], 1
    %s1495 = scalar_lea.sflag [#allocation3], 1
    %1496 = vsyncpa %s1495, 1

</llo_original>
